<compile_context>
chip_gen: v7x
topology: tpu7x:2x2x1
jax: 0.10.0
libtpu: 0.0.40
codegen_flags: <defaults>
</compile_context>

<pallas_src>
import jax
import jax.numpy as jnp
from jax.experimental import pallas as pl
from jax.experimental.pallas import tpu as pltpu


def decoder_steps_kernel(enc_ref, h0_ref, c0_ref, emb_ref,
                         we_h_ref, we_e_ref, be_ref,
                         wih_ctx_ref, wih_emb_ref, whh_ref, b_rnn_ref,
                         wfc_ref, bfc_ref,
                         pred_ref, h_out_ref, c_out_ref,
                         e_enc_ref):
    """One decode step per grid iteration t (teacher-forced token t).

    Layouts (batch-major inside the kernel):
      enc_ref   : (N, S, 2H) f32   encoder states, VMEM-resident across steps
      emb_ref   : (1, N, E)  bf16  embedding of this step's input token
      h/c out   : (N, H)     f32   carried hidden/cell state (accumulator pattern)
      pred_ref  : (1, N, V)  f32   this step's logits
      e_enc_ref : (N, S)     f32   scratch: loop-invariant encoder energy term
    """
    t = pl.program_id(0)
    H = h_out_ref.shape[-1]

    @pl.when(t == 0)
    def _init():
        # Carried state starts from the provided (hidden, cell).
        h_out_ref[...] = h0_ref[...]
        c_out_ref[...] = c0_ref[...]
        # Encoder-side part of the 3H->1 energy linear does not depend on h:
        # hoist it out of the decode loop (VPU multiply + lane reduce, no MXU).
        e_enc_ref[...] = jnp.sum(enc_ref[...] * we_e_ref[...], axis=-1)

    enc = enc_ref[...]                 # (N, S, 2H) f32
    h = h_out_ref[...]                 # (N, H) f32   state from step t-1 (or init)
    c = c_out_ref[...]                 # (N, H) f32
    emb = emb_ref[0]                   # (N, E) bf16

    # ---- attention energy: relu(Linear_{3H->1}([h ; enc_s])), split h / enc parts ----
    e_h = jnp.sum(h * we_h_ref[...], axis=-1, keepdims=True)        # (N, 1)  VPU + reduce
    energy = jnp.maximum(e_enc_ref[...] + e_h + be_ref[...], 0.0)   # (N, S)

    # ---- softmax over the sequence axis (PyTorch Softmax(dim=0)) ----
    m = jnp.max(energy, axis=-1, keepdims=True)
    p = jnp.exp(energy - m)
    denom = jnp.sum(p, axis=-1, keepdims=True)
    attn = p * pl.reciprocal(denom, approx=True)                    # (N, S)

    # ---- context vector == bmm(attn, enc): weighted sum over S (VPU + reduce) ----
    context = jnp.sum(attn[:, :, None] * enc, axis=1)               # (N, 2H) f32

    # ---- single-step LSTM on [context ; embedding]; concat avoided by splitting W_ih ----
    gates = (jnp.dot(context.astype(jnp.bfloat16), wih_ctx_ref[...],
                     preferred_element_type=jnp.float32)
             + jnp.dot(emb, wih_emb_ref[...],
                       preferred_element_type=jnp.float32)
             + jnp.dot(h.astype(jnp.bfloat16), whh_ref[...],
                       preferred_element_type=jnp.float32)
             + b_rnn_ref[...])                                      # (N, 4H) f32
    i_g = jax.nn.sigmoid(gates[:, 0:H])
    f_g = jax.nn.sigmoid(gates[:, H:2 * H])
    g_g = jnp.tanh(gates[:, 2 * H:3 * H])
    o_g = jax.nn.sigmoid(gates[:, 3 * H:4 * H])
    c_new = f_g * c + i_g * g_g
    h_new = o_g * jnp.tanh(c_new)

    # ---- output projection fc: hidden -> vocab ----
    pred = jnp.dot(h_new.astype(jnp.bfloat16), wfc_ref[...],
                   preferred_element_type=jnp.float32) + bfc_ref[...]

    pred_ref[0] = pred
    h_out_ref[...] = h_new
    c_out_ref[...] = c_new


def decoder_forward(params, tokens, encoder_states, hidden, cell):
    """Fused Pallas equivalent of T sequential Decoder.forward steps.

    tokens         : (T, N) int32 teacher-forced decoder input tokens
    encoder_states : (S, N, 2H) f32 (time-major, as in the PyTorch module)
    hidden, cell   : (1, N, H) f32
    Returns (predictions (T, N, V), hidden (1, N, H), cell (1, N, H)).
    """
    T, N = tokens.shape
    S = encoder_states.shape[0]
    H = hidden.shape[-1]
    twoH = 2 * H
    E = params["emb_table"].shape[1]
    V = params["b_fc"].shape[-1]

    # One-time layout / dtype prep outside the kernel (amortized over all T steps).
    enc_bm = jnp.transpose(encoder_states, (1, 0, 2))                            # (N, S, 2H)
    # TODO(synk): nn.Dropout(p) is identity in eval mode; not applied to the embedding.
    emb_all = jnp.take(params["emb_table"], tokens, axis=0).astype(jnp.bfloat16)  # (T, N, E)
    wih_ctx = params["w_ih_ctx_t"].astype(jnp.bfloat16)                          # (2H, 4H)
    wih_emb = params["w_ih_emb_t"].astype(jnp.bfloat16)                          # (E, 4H)
    whh = params["w_hh_t"].astype(jnp.bfloat16)                                  # (H, 4H)
    wfc = params["w_fc_t"].astype(jnp.bfloat16)                                  # (H, V)

    def const(shape):
        # Constant block index across the step axis => DMA'd once, VMEM-resident.
        return pl.BlockSpec(shape, lambda t: (0,) * len(shape))

    grid_spec = pltpu.PrefetchScalarGridSpec(
        num_scalar_prefetch=0,
        grid=(T,),
        in_specs=[
            const((N, S, twoH)),                           # encoder states (resident)
            const((N, H)),                                 # h0
            const((N, H)),                                 # c0
            pl.BlockSpec((1, N, E), lambda t: (t, 0, 0)),  # embedding, streamed per step
            const((1, H)),                                 # we_h
            const((1, twoH)),                              # we_e
            const((1, 1)),                                 # b_e
            const((twoH, 4 * H)),                          # W_ih (context half)
            const((E, 4 * H)),                             # W_ih (embedding half)
            const((H, 4 * H)),                             # W_hh
            const((1, 4 * H)),                             # b_ih + b_hh
            const((H, V)),                                 # W_fc
            const((1, V)),                                 # b_fc
        ],
        out_specs=[
            pl.BlockSpec((1, N, V), lambda t: (t, 0, 0)),  # per-step logits
            pl.BlockSpec((N, H), lambda t: (0, 0)),        # carried hidden (resident)
            pl.BlockSpec((N, H), lambda t: (0, 0)),        # carried cell (resident)
        ],
        scratch_shapes=[pltpu.VMEM((N, S), jnp.float32)],  # hoisted encoder energy term
    )

    preds, h_new, c_new = pl.pallas_call(
        decoder_steps_kernel,
        out_shape=(
            jax.ShapeDtypeStruct((T, N, V), jnp.float32),
            jax.ShapeDtypeStruct((N, H), jnp.float32),
            jax.ShapeDtypeStruct((N, H), jnp.float32),
        ),
        grid_spec=grid_spec,
        compiler_params=pltpu.CompilerParams(
            dimension_semantics=("arbitrary",)),           # steps carry state: sequential
    )(enc_bm, hidden[0], cell[0], emb_all,
      params["we_h"], params["we_e"], params["b_e"],
      wih_ctx, wih_emb, whh, params["b_rnn"], wfc, params["b_fc"])

    # TODO(synk): at realistic vocab sizes (V ~ 30k) tile the fc projection over V
    # (mandatory within v7x's 64 MiB VMEM); at these demo shapes everything fits.
    return preds, h_new[None], c_new[None]


def decoder_forward_ref(params, tokens, encoder_states, hidden, cell):
    """Pure-JAX reference: T applications of the PyTorch eval-mode forward.

    Mirrors the kernel's bf16 cast of matmul operands (f32 accumulation) so the
    comparison tolerance stays tight; otherwise identical math to the module.
    """
    T, _ = tokens.shape
    H = hidden.shape[-1]
    emb_all = jnp.take(params["emb_table"], tokens, axis=0).astype(jnp.bfloat16)
    wih_ctx = params["w_ih_ctx_t"].astype(jnp.bfloat16)
    wih_emb = params["w_ih_emb_t"].astype(jnp.bfloat16)
    whh = params["w_hh_t"].astype(jnp.bfloat16)
    wfc = params["w_fc_t"].astype(jnp.bfloat16)

    h, c = hidden[0], cell[0]
    e_enc = jnp.sum(encoder_states * params["we_e"], axis=-1)           # (S, N)
    preds = []
    for t in range(T):
        e_h = jnp.sum(h * params["we_h"], axis=-1)                       # (N,)
        energy = jax.nn.relu(e_enc + e_h[None, :] + params["b_e"][0, 0])
        attn = jax.nn.softmax(energy, axis=0)                            # softmax over seq
        context = jnp.sum(attn[:, :, None] * encoder_states, axis=0)     # (N, 2H)
        gates = (jnp.dot(context.astype(jnp.bfloat16), wih_ctx,
                         preferred_element_type=jnp.float32)
                 + jnp.dot(emb_all[t], wih_emb, preferred_element_type=jnp.float32)
                 + jnp.dot(h.astype(jnp.bfloat16), whh, preferred_element_type=jnp.float32)
                 + params["b_rnn"])
        i = jax.nn.sigmoid(gates[:, 0:H])
        f = jax.nn.sigmoid(gates[:, H:2 * H])
        g = jnp.tanh(gates[:, 2 * H:3 * H])
        o = jax.nn.sigmoid(gates[:, 3 * H:4 * H])
        c = f * c + i * g
        h = o * jnp.tanh(c)
        preds.append(jnp.dot(h.astype(jnp.bfloat16), wfc,
                             preferred_element_type=jnp.float32) + params["b_fc"])
    return jnp.stack(preds, axis=0), h[None], c[None]


def init_params(key, input_size, embedding_size, hidden_size, output_size):
    H, E, V = hidden_size, embedding_size, output_size
    ks = jax.random.split(key, 8)
    scale = 0.1
    # nn.Embedding(input_size, E)
    emb_table = scale * jax.random.normal(ks[0], (input_size, E), jnp.float32)
    # nn.Linear(3H, 1): weight (1, 3H) split into h-part (H) and encoder-part (2H)
    we_full = scale * jax.random.normal(ks[1], (1, 3 * H), jnp.float32)
    we_h, we_e = we_full[:, :H], we_full[:, H:]
    b_e = scale * jax.random.normal(ks[2], (1, 1), jnp.float32)
    # nn.LSTM(2H + E, H, 1): W_ih^T (2H+E, 4H) split into context / embedding halves
    w_ih_t = scale * jax.random.normal(ks[3], (2 * H + E, 4 * H), jnp.float32)
    w_ih_ctx_t, w_ih_emb_t = w_ih_t[:2 * H], w_ih_t[2 * H:]
    w_hh_t = scale * jax.random.normal(ks[4], (H, 4 * H), jnp.float32)
    b_rnn = scale * jax.random.normal(ks[5], (1, 4 * H), jnp.float32)   # b_ih + b_hh
    # nn.Linear(H, V)
    w_fc_t = scale * jax.random.normal(ks[6], (H, V), jnp.float32)
    b_fc = scale * jax.random.normal(ks[7], (1, V), jnp.float32)
    return dict(emb_table=emb_table, we_h=we_h, we_e=we_e, b_e=b_e,
                w_ih_ctx_t=w_ih_ctx_t, w_ih_emb_t=w_ih_emb_t,
                w_hh_t=w_hh_t, b_rnn=b_rnn, w_fc_t=w_fc_t, b_fc=b_fc)


if __name__ == "__main__":
    # Small but lane-dense shapes: H=128 / 2H=256 / 4H=512 / V=256 / E=128 are
    # multiples of 128, batch N=8 fills the sublanes, T=4 fused decode steps.
    N, S, T = 8, 8, 4
    H, E, V = 128, 128, 256
    input_size = 50

    key = jax.random.PRNGKey(0)
    kp, kx, ke, kh, kc = jax.random.split(key, 5)

    params = init_params(kp, input_size, E, H, V)
    tokens = jax.random.randint(kx, (T, N), 0, input_size, dtype=jnp.int32)
    encoder_states = jax.random.normal(ke, (S, N, 2 * H), jnp.float32)
    hidden = jax.random.normal(kh, (1, N, H), jnp.float32)
    cell = jax.random.normal(kc, (1, N, H), jnp.float32)

    preds, h_new, c_new = decoder_forward(params, tokens, encoder_states, hidden, cell)
    jax.block_until_ready((preds, h_new, c_new))

    preds_r, h_r, c_r = decoder_forward_ref(params, tokens, encoder_states, hidden, cell)
    assert preds.shape == (T, N, V)
    assert h_new.shape == (1, N, H) and c_new.shape == (1, N, H)
    # bf16 matmul operands are mirrored in the reference; the remaining delta is
    # the EUP approximate reciprocal used for the softmax normalization.
    assert jnp.allclose(preds, preds_r, atol=5e-3, rtol=5e-3)
    assert jnp.allclose(h_new, h_r, atol=5e-3, rtol=5e-3)
    assert jnp.allclose(c_new, c_r, atol=5e-3, rtol=5e-3)

    print("KERNEL_OK")
</pallas_src>

<mosaic_0001>
module attributes {stable_mosaic.version = 11 : i64} {
  func.func @decoder_steps_kernel(%arg0: i32, %arg1: memref<8x8x256xf32, #tpu.memory_space<vmem>>, %arg2: memref<8x128xf32, #tpu.memory_space<vmem>>, %arg3: memref<8x128xf32, #tpu.memory_space<vmem>>, %arg4: memref<1x8x128xbf16, #tpu.memory_space<vmem>>, %arg5: memref<1x128xf32, #tpu.memory_space<vmem>>, %arg6: memref<1x256xf32, #tpu.memory_space<vmem>>, %arg7: memref<1x1xf32, #tpu.memory_space<vmem>>, %arg8: memref<256x512xbf16, #tpu.memory_space<vmem>>, %arg9: memref<128x512xbf16, #tpu.memory_space<vmem>>, %arg10: memref<128x512xbf16, #tpu.memory_space<vmem>>, %arg11: memref<1x512xf32, #tpu.memory_space<vmem>>, %arg12: memref<128x256xbf16, #tpu.memory_space<vmem>>, %arg13: memref<1x256xf32, #tpu.memory_space<vmem>>, %arg14: memref<1x8x256xf32, #tpu.memory_space<vmem>>, %arg15: memref<8x128xf32, #tpu.memory_space<vmem>>, %arg16: memref<8x128xf32, #tpu.memory_space<vmem>>, %arg17: memref<8x8xf32, #tpu.memory_space<vmem>>) attributes {dimension_semantics = [#tpu.dimension_semantics<arbitrary>], iteration_bounds = array<i64: 4>, scalar_prefetch = 0 : i64, scratch_operands = 1 : i64, tpu.core_type = #tpu.core_type<tc>, window_params = [{pipeline_mode = #tpu.pipeline_mode<synchronous>, transform_indices = @transform_0, window_bounds = array<i64: 8, 8, 256>}, {pipeline_mode = #tpu.pipeline_mode<synchronous>, transform_indices = @transform_1, window_bounds = array<i64: 8, 128>}, {pipeline_mode = #tpu.pipeline_mode<synchronous>, transform_indices = @transform_2, window_bounds = array<i64: 8, 128>}, {transform_indices = @transform_3, window_bounds = array<i64: 1, 8, 128>}, {pipeline_mode = #tpu.pipeline_mode<synchronous>, transform_indices = @transform_4, window_bounds = array<i64: 1, 128>}, {pipeline_mode = #tpu.pipeline_mode<synchronous>, transform_indices = @transform_5, window_bounds = array<i64: 1, 256>}, {pipeline_mode = #tpu.pipeline_mode<synchronous>, transform_indices = @transform_6, window_bounds = array<i64: 1, 1>}, {pipeline_mode = #tpu.pipeline_mode<synchronous>, transform_indices = @transform_7, window_bounds = array<i64: 256, 512>}, {pipeline_mode = #tpu.pipeline_mode<synchronous>, transform_indices = @transform_8, window_bounds = array<i64: 128, 512>}, {pipeline_mode = #tpu.pipeline_mode<synchronous>, transform_indices = @transform_9, window_bounds = array<i64: 128, 512>}, {pipeline_mode = #tpu.pipeline_mode<synchronous>, transform_indices = @transform_10, window_bounds = array<i64: 1, 512>}, {pipeline_mode = #tpu.pipeline_mode<synchronous>, transform_indices = @transform_11, window_bounds = array<i64: 128, 256>}, {pipeline_mode = #tpu.pipeline_mode<synchronous>, transform_indices = @transform_12, window_bounds = array<i64: 1, 256>}, {transform_indices = @transform_13, window_bounds = array<i64: 1, 8, 256>}, {pipeline_mode = #tpu.pipeline_mode<synchronous>, transform_indices = @transform_14, window_bounds = array<i64: 8, 128>}, {pipeline_mode = #tpu.pipeline_mode<synchronous>, transform_indices = @transform_15, window_bounds = array<i64: 8, 128>}]} {
    %c0_i32 = arith.constant 0 : i32
    %0 = arith.cmpi eq, %arg0, %c0_i32 : i32
    %1 = arith.extui %0 : i1 to i32
    %c0_i32_0 = arith.constant 0 : i32
    %2 = arith.cmpi ne, %1, %c0_i32_0 : i32
    scf.if %2 {
      %c0_46 = arith.constant 0 : index
      %c0_47 = arith.constant 0 : index
      %84 = vector.load %arg2[%c0_46, %c0_47] : memref<8x128xf32, #tpu.memory_space<vmem>>, vector<8x128xf32>
      %c0_48 = arith.constant 0 : index
      %c0_49 = arith.constant 0 : index
      %85 = vector.load %arg15[%c0_48, %c0_49] : memref<8x128xf32, #tpu.memory_space<vmem>>, vector<8x128xf32>
      tpu.vector_store %arg15[%c0_48, %c0_49], %84 {strides = array<i32>} : memref<8x128xf32, #tpu.memory_space<vmem>>, vector<8x128xf32>,
      %c0_50 = arith.constant 0 : index
      %c0_51 = arith.constant 0 : index
      %86 = vector.load %arg3[%c0_50, %c0_51] : memref<8x128xf32, #tpu.memory_space<vmem>>, vector<8x128xf32>
      %c0_52 = arith.constant 0 : index
      %c0_53 = arith.constant 0 : index
      %87 = vector.load %arg16[%c0_52, %c0_53] : memref<8x128xf32, #tpu.memory_space<vmem>>, vector<8x128xf32>
      tpu.vector_store %arg16[%c0_52, %c0_53], %86 {strides = array<i32>} : memref<8x128xf32, #tpu.memory_space<vmem>>, vector<8x128xf32>,
      %c0_54 = arith.constant 0 : index
      %c0_55 = arith.constant 0 : index
      %c0_56 = arith.constant 0 : index
      %88 = vector.load %arg1[%c0_54, %c0_55, %c0_56] : memref<8x8x256xf32, #tpu.memory_space<vmem>>, vector<8x8x256xf32>
      %c0_57 = arith.constant 0 : index
      %c0_58 = arith.constant 0 : index
      %89 = vector.load %arg6[%c0_57, %c0_58] : memref<1x256xf32, #tpu.memory_space<vmem>>, vector<1x256xf32>
      %90 = vector.shape_cast %89 : vector<1x256xf32> to vector<1x1x256xf32>
      %91 = vector.broadcast %90 : vector<1x1x256xf32> to vector<8x8x256xf32>
      %92 = arith.mulf %88, %91 : vector<8x8x256xf32>
      %cst_59 = arith.constant dense<0.000000e+00> : vector<8x8xf32>
      %93 = vector.multi_reduction <add>, %92, %cst_59 [2] : vector<8x8x256xf32> to vector<8x8xf32>
      %c0_60 = arith.constant 0 : index
      %c0_61 = arith.constant 0 : index
      %94 = vector.load %arg17[%c0_60, %c0_61] : memref<8x8xf32, #tpu.memory_space<vmem>>, vector<8x8xf32>
      tpu.vector_store %arg17[%c0_60, %c0_61], %93 {strides = array<i32>} : memref<8x8xf32, #tpu.memory_space<vmem>>, vector<8x8xf32>,
    } else {
    }
    %c0 = arith.constant 0 : index
    %c0_1 = arith.constant 0 : index
    %c0_2 = arith.constant 0 : index
    %3 = vector.load %arg1[%c0, %c0_1, %c0_2] : memref<8x8x256xf32, #tpu.memory_space<vmem>>, vector<8x8x256xf32>
    %c0_3 = arith.constant 0 : index
    %c0_4 = arith.constant 0 : index
    %4 = vector.load %arg15[%c0_3, %c0_4] : memref<8x128xf32, #tpu.memory_space<vmem>>, vector<8x128xf32>
    %c0_5 = arith.constant 0 : index
    %c0_6 = arith.constant 0 : index
    %5 = vector.load %arg16[%c0_5, %c0_6] : memref<8x128xf32, #tpu.memory_space<vmem>>, vector<8x128xf32>
    %c0_7 = arith.constant 0 : index
    %c0_8 = arith.constant 0 : index
    %c0_9 = arith.constant 0 : index
    %6 = vector.load %arg4[%c0_7, %c0_8, %c0_9] : memref<1x8x128xbf16, #tpu.memory_space<vmem>>, vector<1x8x128xbf16>
    %7 = vector.shape_cast %6 : vector<1x8x128xbf16> to vector<8x128xbf16>
    %c0_10 = arith.constant 0 : index
    %c0_11 = arith.constant 0 : index
    %8 = vector.load %arg5[%c0_10, %c0_11] : memref<1x128xf32, #tpu.memory_space<vmem>>, vector<1x128xf32>
    %9 = vector.broadcast %8 : vector<1x128xf32> to vector<8x128xf32>
    %10 = arith.mulf %4, %9 : vector<8x128xf32>
    %cst = arith.constant dense<0.000000e+00> : vector<8xf32>
    %11 = vector.multi_reduction <add>, %10, %cst [1] : vector<8x128xf32> to vector<8xf32>
    %12 = vector.shape_cast %11 : vector<8xf32> to vector<8x1xf32>
    %c0_12 = arith.constant 0 : index
    %c0_13 = arith.constant 0 : index
    %13 = vector.load %arg17[%c0_12, %c0_13] : memref<8x8xf32, #tpu.memory_space<vmem>>, vector<8x8xf32>
    %14 = vector.broadcast %12 : vector<8x1xf32> to vector<8x8xf32>
    %15 = arith.addf %13, %14 : vector<8x8xf32>
    %c0_14 = arith.constant 0 : index
    %c0_15 = arith.constant 0 : index
    %16 = vector.load %arg7[%c0_14, %c0_15] : memref<1x1xf32, #tpu.memory_space<vmem>>, vector<1x1xf32>
    %17 = vector.broadcast %16 : vector<1x1xf32> to vector<8x8xf32>
    %18 = arith.addf %15, %17 : vector<8x8xf32>
    %cst_16 = arith.constant 0.000000e+00 : f32
    %19 = vector.broadcast %cst_16 : f32 to vector<8x8xf32>
    %20 = arith.maximumf %18, %19 : vector<8x8xf32>
    %cst_17 = arith.constant dense<0xFF800000> : vector<8xf32>
    %21 = vector.multi_reduction <maximumf>, %20, %cst_17 [1] : vector<8x8xf32> to vector<8xf32>
    %22 = vector.shape_cast %21 : vector<8xf32> to vector<8x1xf32>
    %23 = vector.broadcast %22 : vector<8x1xf32> to vector<8x8xf32>
    %24 = arith.subf %20, %23 : vector<8x8xf32>
    %25 = math.exp %24 : vector<8x8xf32>
    %cst_18 = arith.constant dense<0.000000e+00> : vector<8xf32>
    %26 = vector.multi_reduction <add>, %25, %cst_18 [1] : vector<8x8xf32> to vector<8xf32>
    %27 = vector.shape_cast %26 : vector<8xf32> to vector<8x1xf32>
    %28 = tpu.reciprocal %27 {approx = true} : vector<8x1xf32> -> vector<8x1xf32>
    %29 = vector.broadcast %28 : vector<8x1xf32> to vector<8x8xf32>
    %30 = arith.mulf %25, %29 : vector<8x8xf32>
    %31 = vector.shape_cast %30 : vector<8x8xf32> to vector<8x8x1xf32>
    %32 = vector.broadcast %31 : vector<8x8x1xf32> to vector<8x8x256xf32>
    %33 = arith.mulf %32, %3 : vector<8x8x256xf32>
    %cst_19 = arith.constant dense<0.000000e+00> : vector<8x256xf32>
    %34 = vector.multi_reduction <add>, %33, %cst_19 [1] : vector<8x8x256xf32> to vector<8x256xf32>
    %35 = arith.truncf %34 : vector<8x256xf32> to vector<8x256xbf16>
    %c0_20 = arith.constant 0 : index
    %c0_21 = arith.constant 0 : index
    %36 = vector.load %arg8[%c0_20, %c0_21] : memref<256x512xbf16, #tpu.memory_space<vmem>>, vector<256x512xbf16>
    %cst_22 = arith.constant dense<0.000000e+00> : vector<8x512xf32>
    %37 = tpu.matmul %35, %36, %cst_22 {dimension_numbers = #tpu.dot_dimension_numbers<[1], [0], [0], [1], [0, 0, 1, 1], [], []>} : vector<8x256xbf16>, vector<256x512xbf16>, vector<8x512xf32> -> vector<8x512xf32>
    %c0_23 = arith.constant 0 : index
    %c0_24 = arith.constant 0 : index
    %38 = vector.load %arg9[%c0_23, %c0_24] : memref<128x512xbf16, #tpu.memory_space<vmem>>, vector<128x512xbf16>
    %cst_25 = arith.constant dense<0.000000e+00> : vector<8x512xf32>
    %39 = tpu.matmul %7, %38, %cst_25 {dimension_numbers = #tpu.dot_dimension_numbers<[1], [0], [0], [1], [0, 0, 1, 1], [], []>} : vector<8x128xbf16>, vector<128x512xbf16>, vector<8x512xf32> -> vector<8x512xf32>
    %40 = arith.addf %37, %39 : vector<8x512xf32>
    %41 = arith.truncf %4 : vector<8x128xf32> to vector<8x128xbf16>
    %c0_26 = arith.constant 0 : index
    %c0_27 = arith.constant 0 : index
    %42 = vector.load %arg10[%c0_26, %c0_27] : memref<128x512xbf16, #tpu.memory_space<vmem>>, vector<128x512xbf16>
    %cst_28 = arith.constant dense<0.000000e+00> : vector<8x512xf32>
    %43 = tpu.matmul %41, %42, %cst_28 {dimension_numbers = #tpu.dot_dimension_numbers<[1], [0], [0], [1], [0, 0, 1, 1], [], []>} : vector<8x128xbf16>, vector<128x512xbf16>, vector<8x512xf32> -> vector<8x512xf32>
    %44 = arith.addf %40, %43 : vector<8x512xf32>
    %c0_29 = arith.constant 0 : index
    %c0_30 = arith.constant 0 : index
    %45 = vector.load %arg11[%c0_29, %c0_30] : memref<1x512xf32, #tpu.memory_space<vmem>>, vector<1x512xf32>
    %46 = vector.broadcast %45 : vector<1x512xf32> to vector<8x512xf32>
    %47 = arith.addf %44, %46 : vector<8x512xf32>
    %48 = vector.extract_strided_slice %47 {offsets = [0, 0], sizes = [8, 128], strides = [1, 1]} : vector<8x512xf32> to vector<8x128xf32>
    %49 = arith.negf %48 : vector<8x128xf32>
    %50 = math.exp %49 : vector<8x128xf32>
    %cst_31 = arith.constant 1.000000e+00 : f32
    %51 = vector.broadcast %cst_31 : f32 to vector<8x128xf32>
    %52 = arith.addf %51, %50 : vector<8x128xf32>
    %53 = arith.divf %51, %52 : vector<8x128xf32>
    %54 = vector.extract_strided_slice %47 {offsets = [0, 128], sizes = [8, 128], strides = [1, 1]} : vector<8x512xf32> to vector<8x128xf32>
    %55 = arith.negf %54 : vector<8x128xf32>
    %56 = math.exp %55 : vector<8x128xf32>
    %cst_32 = arith.constant 1.000000e+00 : f32
    %57 = vector.broadcast %cst_32 : f32 to vector<8x128xf32>
    %58 = arith.addf %57, %56 : vector<8x128xf32>
    %59 = arith.divf %57, %58 : vector<8x128xf32>
    %60 = vector.extract_strided_slice %47 {offsets = [0, 256], sizes = [8, 128], strides = [1, 1]} : vector<8x512xf32> to vector<8x128xf32>
    %61 = math.tanh %60 : vector<8x128xf32>
    %62 = vector.extract_strided_slice %47 {offsets = [0, 384], sizes = [8, 128], strides = [1, 1]} : vector<8x512xf32> to vector<8x128xf32>
    %63 = arith.negf %62 : vector<8x128xf32>
    %64 = math.exp %63 : vector<8x128xf32>
    %cst_33 = arith.constant 1.000000e+00 : f32
    %65 = vector.broadcast %cst_33 : f32 to vector<8x128xf32>
    %66 = arith.addf %65, %64 : vector<8x128xf32>
    %67 = arith.divf %65, %66 : vector<8x128xf32>
    %68 = arith.mulf %59, %5 : vector<8x128xf32>
    %69 = arith.mulf %53, %61 : vector<8x128xf32>
    %70 = arith.addf %68, %69 : vector<8x128xf32>
    %71 = math.tanh %70 : vector<8x128xf32>
    %72 = arith.mulf %67, %71 : vector<8x128xf32>
    %73 = arith.truncf %72 : vector<8x128xf32> to vector<8x128xbf16>
    %c0_34 = arith.constant 0 : index
    %c0_35 = arith.constant 0 : index
    %74 = vector.load %arg12[%c0_34, %c0_35] : memref<128x256xbf16, #tpu.memory_space<vmem>>, vector<128x256xbf16>
    %cst_36 = arith.constant dense<0.000000e+00> : vector<8x256xf32>
    %75 = tpu.matmul %73, %74, %cst_36 {dimension_numbers = #tpu.dot_dimension_numbers<[1], [0], [0], [1], [0, 0, 1, 1], [], []>} : vector<8x128xbf16>, vector<128x256xbf16>, vector<8x256xf32> -> vector<8x256xf32>
    %c0_37 = arith.constant 0 : index
    %c0_38 = arith.constant 0 : index
    %76 = vector.load %arg13[%c0_37, %c0_38] : memref<1x256xf32, #tpu.memory_space<vmem>>, vector<1x256xf32>
    %77 = vector.broadcast %76 : vector<1x256xf32> to vector<8x256xf32>
    %78 = arith.addf %75, %77 : vector<8x256xf32>
    %c0_39 = arith.constant 0 : index
    %c0_40 = arith.constant 0 : index
    %c0_41 = arith.constant 0 : index
    %79 = vector.load %arg14[%c0_39, %c0_40, %c0_41] : memref<1x8x256xf32, #tpu.memory_space<vmem>>, vector<1x8x256xf32>
    %80 = vector.shape_cast %79 : vector<1x8x256xf32> to vector<8x256xf32>
    %81 = vector.shape_cast %78 : vector<8x256xf32> to vector<1x8x256xf32>
    tpu.vector_store %arg14[%c0_39, %c0_40, %c0_41], %81 {strides = array<i32>} : memref<1x8x256xf32, #tpu.memory_space<vmem>>, vector<1x8x256xf32>,
    %c0_42 = arith.constant 0 : index
    %c0_43 = arith.constant 0 : index
    %82 = vector.load %arg15[%c0_42, %c0_43] : memref<8x128xf32, #tpu.memory_space<vmem>>, vector<8x128xf32>
    tpu.vector_store %arg15[%c0_42, %c0_43], %72 {strides = array<i32>} : memref<8x128xf32, #tpu.memory_space<vmem>>, vector<8x128xf32>,
    %c0_44 = arith.constant 0 : index
    %c0_45 = arith.constant 0 : index
    %83 = vector.load %arg16[%c0_44, %c0_45] : memref<8x128xf32, #tpu.memory_space<vmem>>, vector<8x128xf32>
    tpu.vector_store %arg16[%c0_44, %c0_45], %70 {strides = array<i32>} : memref<8x128xf32, #tpu.memory_space<vmem>>, vector<8x128xf32>,
    return
  }
  func.func @transform_0(%arg0: i32) -> (i32, i32, i32) {
    %c0_i32 = arith.constant 0 : i32
    %c0_i32_0 = arith.constant 0 : i32
    %c0_i32_1 = arith.constant 0 : i32
    %c0_i32_2 = arith.constant 0 : i32
    return %c0_i32, %c0_i32_0, %c0_i32_1 : i32, i32, i32
  }
  func.func @transform_1(%arg0: i32) -> (i32, i32) {
    %c0_i32 = arith.constant 0 : i32
    %c0_i32_0 = arith.constant 0 : i32
    %c0_i32_1 = arith.constant 0 : i32
    return %c0_i32, %c0_i32_0 : i32, i32
  }
  func.func @transform_2(%arg0: i32) -> (i32, i32) {
    %c0_i32 = arith.constant 0 : i32
    %c0_i32_0 = arith.constant 0 : i32
    %c0_i32_1 = arith.constant 0 : i32
    return %c0_i32, %c0_i32_0 : i32, i32
  }
  func.func @transform_3(%arg0: i32) -> (i32, i32, i32) {
    %c0_i32 = arith.constant 0 : i32
    %c0_i32_0 = arith.constant 0 : i32
    %c0_i32_1 = arith.constant 0 : i32
    return %arg0, %c0_i32, %c0_i32_0 : i32, i32, i32
  }
  func.func @transform_4(%arg0: i32) -> (i32, i32) {
    %c0_i32 = arith.constant 0 : i32
    %c0_i32_0 = arith.constant 0 : i32
    %c0_i32_1 = arith.constant 0 : i32
    return %c0_i32, %c0_i32_0 : i32, i32
  }
  func.func @transform_5(%arg0: i32) -> (i32, i32) {
    %c0_i32 = arith.constant 0 : i32
    %c0_i32_0 = arith.constant 0 : i32
    %c0_i32_1 = arith.constant 0 : i32
    return %c0_i32, %c0_i32_0 : i32, i32
  }
  func.func @transform_6(%arg0: i32) -> (i32, i32) {
    %c0_i32 = arith.constant 0 : i32
    %c0_i32_0 = arith.constant 0 : i32
    %c0_i32_1 = arith.constant 0 : i32
    return %c0_i32, %c0_i32_0 : i32, i32
  }
  func.func @transform_7(%arg0: i32) -> (i32, i32) {
    %c0_i32 = arith.constant 0 : i32
    %c0_i32_0 = arith.constant 0 : i32
    %c0_i32_1 = arith.constant 0 : i32
    return %c0_i32, %c0_i32_0 : i32, i32
  }
  func.func @transform_8(%arg0: i32) -> (i32, i32) {
    %c0_i32 = arith.constant 0 : i32
    %c0_i32_0 = arith.constant 0 : i32
    %c0_i32_1 = arith.constant 0 : i32
    return %c0_i32, %c0_i32_0 : i32, i32
  }
  func.func @transform_9(%arg0: i32) -> (i32, i32) {
    %c0_i32 = arith.constant 0 : i32
    %c0_i32_0 = arith.constant 0 : i32
    %c0_i32_1 = arith.constant 0 : i32
    return %c0_i32, %c0_i32_0 : i32, i32
  }
  func.func @transform_10(%arg0: i32) -> (i32, i32) {
    %c0_i32 = arith.constant 0 : i32
    %c0_i32_0 = arith.constant 0 : i32
    %c0_i32_1 = arith.constant 0 : i32
    return %c0_i32, %c0_i32_0 : i32, i32
  }
  func.func @transform_11(%arg0: i32) -> (i32, i32) {
    %c0_i32 = arith.constant 0 : i32
    %c0_i32_0 = arith.constant 0 : i32
    %c0_i32_1 = arith.constant 0 : i32
    return %c0_i32, %c0_i32_0 : i32, i32
  }
  func.func @transform_12(%arg0: i32) -> (i32, i32) {
    %c0_i32 = arith.constant 0 : i32
    %c0_i32_0 = arith.constant 0 : i32
    %c0_i32_1 = arith.constant 0 : i32
    return %c0_i32, %c0_i32_0 : i32, i32
  }
  func.func @transform_13(%arg0: i32) -> (i32, i32, i32) {
    %c0_i32 = arith.constant 0 : i32
    %c0_i32_0 = arith.constant 0 : i32
    %c0_i32_1 = arith.constant 0 : i32
    return %arg0, %c0_i32, %c0_i32_0 : i32, i32, i32
  }
  func.func @transform_14(%arg0: i32) -> (i32, i32) {
    %c0_i32 = arith.constant 0 : i32
    %c0_i32_0 = arith.constant 0 : i32
    %c0_i32_1 = arith.constant 0 : i32
    return %c0_i32, %c0_i32_0 : i32, i32
  }
  func.func @transform_15(%arg0: i32) -> (i32, i32) {
    %c0_i32 = arith.constant 0 : i32
    %c0_i32_0 = arith.constant 0 : i32
    %c0_i32_1 = arith.constant 0 : i32
    return %c0_i32, %c0_i32_0 : i32, i32
  }
}

</mosaic_0001>

<llo_original>
// kernel: tpu_custom_call.1
$region0: #{tpu_custom_call.1}
  #allocation0 [shape = 'u32[]', space=smem, size = 0x4, offset = 0x4, fixed_abs, tag = 'smem constant byte address 0x4 - core index']
  #allocation1 [shape = 'u32[144,128]{1,0:T(1,128)}', space=vmem, size = 0x12000, scoped, tag = 'internal scratch']
  #allocation2 [shape = 'f32[8,8]{1,0:T(8,128)}', space=vmem, size = 0x1000, scoped, tag = 'scratch operand']
  #allocation3 [shape = 'f32[1,1]{1,0:T(1,128)S(1)}', space=vmem, size = 0x200, scoped, tag = 'scoped memory for tpu_custom_call.1']
  %s0 = inlined_call_operand.hbm [shape: f32[8,8,256], index: 0, kind: input, shape index: {}]
  %s1 = inlined_call_operand.hbm [shape: f32[8,128], index: 1, kind: input, shape index: {}]
  %s2 = inlined_call_operand.vmem [shape: f32[8,128], index: 2, kind: input, shape index: {}]
  %s3 = inlined_call_operand.hbm [shape: bf16[4,8,128], index: 3, kind: input, shape index: {}]
  %s4 = inlined_call_operand.vmem [shape: f32[1,128], index: 4, kind: input, shape index: {}]
  %s5 = inlined_call_operand.vmem [shape: f32[1,256], index: 5, kind: input, shape index: {}]
  %s6 = inlined_call_operand.<no memory space> [shape: f32[1,1], index: 6, kind: input, shape index: {}]
  %s7 = inlined_call_operand.hbm [shape: bf16[256,512], index: 7, kind: input, shape index: {}]
  %s8 = inlined_call_operand.hbm [shape: bf16[128,512], index: 8, kind: input, shape index: {}]
  %s9 = inlined_call_operand.hbm [shape: bf16[128,512], index: 9, kind: input, shape index: {}]
  %s10 = inlined_call_operand.vmem [shape: f32[1,512], index: 10, kind: input, shape index: {}]
  %s11 = inlined_call_operand.hbm [shape: bf16[128,256], index: 11, kind: input, shape index: {}]
  %s12 = inlined_call_operand.vmem [shape: f32[1,256], index: 12, kind: input, shape index: {}]
  %s13 = inlined_call_operand.hbm [shape: f32[4,8,256], index: 13, kind: output, shape index: {0}]
  %s14 = inlined_call_operand.hbm [shape: f32[8,128], index: 14, kind: output, shape index: {1}]
  %s15 = inlined_call_operand.hbm [shape: f32[8,128], index: 15, kind: output, shape index: {2}]
  %16 = xla_tuple %s13, %s14, %s15
  %s17 = sld [smem:[#allocation0]]
  $region133: #{tpu_custom_call.1} parent=0
    _
  %s19 = ssub.s32 1, %s17
  %s20 = scalar_select 0, %s19, %s17
  %v21 = vstv %s6
  %22 = vst [vmem:[#allocation3] sm:$0x1] %v21
  $region1: #{tpu_custom_call.1} parent=0
    #allocation4 [shape = 'u8[65536]{0}', space=vmem, size = 0x10000, scoped, tag = 'input window, operand 0, single buffered']
    #allocation5 [shape = 's32[2]{0}', space=sflag, size = 0x8, scoped, tag = 'scoped memory for tpu_custom_call.1']
    #allocation6 [shape = 's32[2]{0}', space=sflag, size = 0x8, scoped, tag = 'scoped memory for tpu_custom_call.1']
    #allocation7 [shape = 'u8[4096]{0}', space=vmem, size = 0x1000, scoped, tag = 'input window, operand 1, single buffered']
    #allocation8 [shape = 's32[1]{0}', space=sflag, size = 0x4, scoped, tag = 'scoped memory for tpu_custom_call.1']
    #allocation9 [shape = 'u8[4096]{0}', space=vmem, size = 0x1000, scoped, tag = 'input window, operand 3']
    #allocation10 [shape = 'u8[262144]{0}', space=vmem, size = 0x40000, scoped, tag = 'input window, operand 7, single buffered']
    #allocation11 [shape = 'u8[131072]{0}', space=vmem, size = 0x20000, scoped, tag = 'input window, operand 8, single buffered']
    #allocation12 [shape = 's32[1]{0}', space=sflag, size = 0x4, scoped, tag = 'scoped memory for tpu_custom_call.1']
    #allocation13 [shape = 'u8[131072]{0}', space=vmem, size = 0x20000, scoped, tag = 'input window, operand 9, single buffered']
    #allocation14 [shape = 'u8[65536]{0}', space=vmem, size = 0x10000, scoped, tag = 'input window, operand 11, single buffered']
    #allocation15 [shape = 's32[1]{0}', space=sflag, size = 0x4, scoped, tag = 'scoped memory for tpu_custom_call.1']
    #allocation16 [shape = 'u8[16384]{0}', space=vmem, size = 0x4000, scoped, tag = 'output window, operand 0']
    #allocation17 [shape = 'u8[4096]{0}', space=vmem, size = 0x1000, scoped, tag = 'output window, operand 1, single buffered']
    #allocation18 [shape = 's32[1]{0}', space=sflag, size = 0x4, scoped, tag = 'scoped memory for tpu_custom_call.1']
    #allocation19 [shape = 'u8[4096]{0}', space=vmem, size = 0x1000, scoped, tag = 'output window, operand 2, single buffered']
    %23 = vsyncpa [#allocation5], 0
    %24 = vsyncpa [#allocation8], 0
    %25 = vsyncpa [#allocation12], 0
    %26 = vsyncpa [#allocation15], 0
    %27 = vsyncpa [#allocation6], 0
    %s28 = scalar_lea.sflag [#allocation6], 1
    %29 = vsyncpa %s28, 0
    %30 = vsyncpa [#allocation18], 0
    loop: start=0, step=1, limit=6
    $region2: #{tpu_custom_call.1} parent=1 // loop_pre_header
      _
    $region3: #{tpu_custom_call.1} parent=1 // loop_header
      %s32 = sphi 0, %s36
      %p33 = scmp.ge.s32.totalorder %s32, 6
      %s40 = sphi 0, %s40
      %s42 = sphi 0, %s40
      %s43 = sphi 0, %s42
      %s57 = sphi 0, %s43
      %s61 = sphi 0, %s61
      %s63 = sphi 0, %s61
      %s64 = sphi 0, %s63
      %s78 = sphi 0, %s64
      %s82 = sphi 0, %s82
      %s84 = sphi 0, %s82
      %s85 = sphi 0, %s84
      %s99 = sphi 0, %s85
      %s105 = sphi 0, %s107
      %s108 = sphi 0, %s105
      %s109 = sphi 0, %s108
      %s125 = sphi 0, %s109
      %s129 = sphi 0, %s129
      %s131 = sphi 0, %s129
      %s132 = sphi 0, %s131
      %s146 = sphi 0, %s132
      %s150 = sphi 0, %s150
      %s152 = sphi 0, %s150
      %s153 = sphi 0, %s152
      %s167 = sphi 0, %s153
      %s171 = sphi 0, %s171
      %s173 = sphi 0, %s171
      %s174 = sphi 0, %s173
      %s188 = sphi 0, %s174
      %s192 = sphi 0, %s192
      %s194 = sphi 0, %s192
      %s195 = sphi 0, %s194
      %s209 = sphi 0, %s195
      %s213 = sphi 0, %s213
      %s215 = sphi 0, %s213
      %s216 = sphi 0, %s215
      %s230 = sphi 0, %s216
      %s234 = sphi 0, %s234
      %s236 = sphi 0, %s234
      %s237 = sphi 0, %s236
      %s251 = sphi 0, %s237
      %s255 = sphi 0, %s255
      %s257 = sphi 0, %s255
      %s258 = sphi 0, %s257
      %s272 = sphi 0, %s258
      %s276 = sphi 0, %s276
      %s278 = sphi 0, %s276
      %s279 = sphi 0, %s278
      %s293 = sphi 0, %s279
      %s297 = sphi 0, %s297
      %s299 = sphi 0, %s297
      %s300 = sphi 0, %s299
      %s314 = sphi 0, %s300
      %s320 = sphi 0, %s322
      %s323 = sphi 0, %s320
      %s324 = sphi 0, %s323
      %s340 = sphi 0, %s324
      %s344 = sphi 0, %s344
      %s346 = sphi 0, %s344
      %s347 = sphi 0, %s346
      %s361 = sphi 0, %s347
      %s365 = sphi 0, %s365
      %s367 = sphi 0, %s365
      %s368 = sphi 0, %s367
      %s382 = sphi 0, %s368
    $region4: #{tpu_custom_call.1} parent=1 // loop_header_branch
      %35 = sbr.rel (%p33) target = $region8
    $region5: #{tpu_custom_call.1} parent=1 // loop_body
      %s37 = ssub.s32 %s32, 1
      %s38 = ssub.s32 %s32, 2
      %s39 = sadd.s32 %s32, 1
      %s41 = sadd.s32 %s40, 1
      %p44 = scmp.eq.s32.totalorder %s32, 3
      %p45 = scmp.ne.s32.totalorder %s40, %s42
      %p46 = scmp.eq.s32.totalorder %s32, 0
      %p47 = por %p45, %p46
      %p48 = scmp.ne.s32.totalorder %s40, %s42
      %p49 = scmp.eq.s32.totalorder %s37, 3
      %p50 = por %p48, %p49
      %p51 = scmp.ne.s32.totalorder %s42, %s43
      %p52 = scmp.eq.s32.totalorder %s37, 0
      %p53 = por %p51, %p52
      %p54 = scmp.ne.s32.totalorder %s42, %s43
      %p55 = scmp.eq.s32.totalorder %s38, 3
      %p56 = por %p54, %p55
      %p58 = scmp.ne.s32.totalorder %s43, %s57
      %p59 = scmp.eq.s32.totalorder %s38, 0
      %p60 = por %p58, %p59
      %s62 = sadd.s32 %s61, 1
      %p65 = scmp.eq.s32.totalorder %s32, 3
      %p66 = scmp.ne.s32.totalorder %s61, %s63
      %p67 = scmp.eq.s32.totalorder %s32, 0
      %p68 = por %p66, %p67
      %p69 = scmp.ne.s32.totalorder %s61, %s63
      %p70 = scmp.eq.s32.totalorder %s37, 3
      %p71 = por %p69, %p70
      %p72 = scmp.ne.s32.totalorder %s63, %s64
      %p73 = scmp.eq.s32.totalorder %s37, 0
      %p74 = por %p72, %p73
      %p75 = scmp.ne.s32.totalorder %s63, %s64
      %p76 = scmp.eq.s32.totalorder %s38, 3
      %p77 = por %p75, %p76
      %p79 = scmp.ne.s32.totalorder %s64, %s78
      %p80 = scmp.eq.s32.totalorder %s38, 0
      %p81 = por %p79, %p80
      %s83 = sadd.s32 %s82, 1
      %p86 = scmp.eq.s32.totalorder %s32, 3
      %p87 = scmp.ne.s32.totalorder %s82, %s84
      %p88 = scmp.eq.s32.totalorder %s32, 0
      %p89 = por %p87, %p88
      %p90 = scmp.ne.s32.totalorder %s82, %s84
      %p91 = scmp.eq.s32.totalorder %s37, 3
      %p92 = por %p90, %p91
      %p93 = scmp.ne.s32.totalorder %s84, %s85
      %p94 = scmp.eq.s32.totalorder %s37, 0
      %p95 = por %p93, %p94
      %p96 = scmp.ne.s32.totalorder %s84, %s85
      %p97 = scmp.eq.s32.totalorder %s38, 3
      %p98 = por %p96, %p97
      %p100 = scmp.ne.s32.totalorder %s85, %s99
      %p101 = scmp.eq.s32.totalorder %s38, 0
      %p102 = por %p100, %p101
      %s103 = ssub.s32 %s32, %s39
      %p104 = scmp.eq.s32.totalorder %s103, 0
      %s106 = sadd.s32 %s105, 1
      %s107 = scalar_select %p104, %s105, %s106
      %p110 = pneg %p104
      %p111 = scmp.eq.s32.totalorder %s32, 3
      %p112 = por %p110, %p111
      %p113 = scmp.ne.s32.totalorder %s105, %s108
      %p114 = scmp.eq.s32.totalorder %s32, 0
      %p115 = por %p113, %p114
      %p116 = scmp.ne.s32.totalorder %s105, %s108
      %p117 = scmp.eq.s32.totalorder %s37, 3
      %p118 = por %p116, %p117
      %p119 = scmp.ne.s32.totalorder %s108, %s109
      %p120 = scmp.eq.s32.totalorder %s37, 0
      %p121 = por %p119, %p120
      %p122 = scmp.ne.s32.totalorder %s108, %s109
      %p123 = scmp.eq.s32.totalorder %s38, 3
      %p124 = por %p122, %p123
      %p126 = scmp.ne.s32.totalorder %s109, %s125
      %p127 = scmp.eq.s32.totalorder %s38, 0
      %p128 = por %p126, %p127
      %s130 = sadd.s32 %s129, 1
      %p133 = scmp.eq.s32.totalorder %s32, 3
      %p134 = scmp.ne.s32.totalorder %s129, %s131
      %p135 = scmp.eq.s32.totalorder %s32, 0
      %p136 = por %p134, %p135
      %p137 = scmp.ne.s32.totalorder %s129, %s131
      %p138 = scmp.eq.s32.totalorder %s37, 3
      %p139 = por %p137, %p138
      %p140 = scmp.ne.s32.totalorder %s131, %s132
      %p141 = scmp.eq.s32.totalorder %s37, 0
      %p142 = por %p140, %p141
      %p143 = scmp.ne.s32.totalorder %s131, %s132
      %p144 = scmp.eq.s32.totalorder %s38, 3
      %p145 = por %p143, %p144
      %p147 = scmp.ne.s32.totalorder %s132, %s146
      %p148 = scmp.eq.s32.totalorder %s38, 0
      %p149 = por %p147, %p148
      %s151 = sadd.s32 %s150, 1
      %p154 = scmp.eq.s32.totalorder %s32, 3
      %p155 = scmp.ne.s32.totalorder %s150, %s152
      %p156 = scmp.eq.s32.totalorder %s32, 0
      %p157 = por %p155, %p156
      %p158 = scmp.ne.s32.totalorder %s150, %s152
      %p159 = scmp.eq.s32.totalorder %s37, 3
      %p160 = por %p158, %p159
      %p161 = scmp.ne.s32.totalorder %s152, %s153
      %p162 = scmp.eq.s32.totalorder %s37, 0
      %p163 = por %p161, %p162
      %p164 = scmp.ne.s32.totalorder %s152, %s153
      %p165 = scmp.eq.s32.totalorder %s38, 3
      %p166 = por %p164, %p165
      %p168 = scmp.ne.s32.totalorder %s153, %s167
      %p169 = scmp.eq.s32.totalorder %s38, 0
      %p170 = por %p168, %p169
      %s172 = sadd.s32 %s171, 1
      %p175 = scmp.eq.s32.totalorder %s32, 3
      %p176 = scmp.ne.s32.totalorder %s171, %s173
      %p177 = scmp.eq.s32.totalorder %s32, 0
      %p178 = por %p176, %p177
      %p179 = scmp.ne.s32.totalorder %s171, %s173
      %p180 = scmp.eq.s32.totalorder %s37, 3
      %p181 = por %p179, %p180
      %p182 = scmp.ne.s32.totalorder %s173, %s174
      %p183 = scmp.eq.s32.totalorder %s37, 0
      %p184 = por %p182, %p183
      %p185 = scmp.ne.s32.totalorder %s173, %s174
      %p186 = scmp.eq.s32.totalorder %s38, 3
      %p187 = por %p185, %p186
      %p189 = scmp.ne.s32.totalorder %s174, %s188
      %p190 = scmp.eq.s32.totalorder %s38, 0
      %p191 = por %p189, %p190
      %s193 = sadd.s32 %s192, 1
      %p196 = scmp.eq.s32.totalorder %s32, 3
      %p197 = scmp.ne.s32.totalorder %s192, %s194
      %p198 = scmp.eq.s32.totalorder %s32, 0
      %p199 = por %p197, %p198
      %p200 = scmp.ne.s32.totalorder %s192, %s194
      %p201 = scmp.eq.s32.totalorder %s37, 3
      %p202 = por %p200, %p201
      %p203 = scmp.ne.s32.totalorder %s194, %s195
      %p204 = scmp.eq.s32.totalorder %s37, 0
      %p205 = por %p203, %p204
      %p206 = scmp.ne.s32.totalorder %s194, %s195
      %p207 = scmp.eq.s32.totalorder %s38, 3
      %p208 = por %p206, %p207
      %p210 = scmp.ne.s32.totalorder %s195, %s209
      %p211 = scmp.eq.s32.totalorder %s38, 0
      %p212 = por %p210, %p211
      %s214 = sadd.s32 %s213, 1
      %p217 = scmp.eq.s32.totalorder %s32, 3
      %p218 = scmp.ne.s32.totalorder %s213, %s215
      %p219 = scmp.eq.s32.totalorder %s32, 0
      %p220 = por %p218, %p219
      %p221 = scmp.ne.s32.totalorder %s213, %s215
      %p222 = scmp.eq.s32.totalorder %s37, 3
      %p223 = por %p221, %p222
      %p224 = scmp.ne.s32.totalorder %s215, %s216
      %p225 = scmp.eq.s32.totalorder %s37, 0
      %p226 = por %p224, %p225
      %p227 = scmp.ne.s32.totalorder %s215, %s216
      %p228 = scmp.eq.s32.totalorder %s38, 3
      %p229 = por %p227, %p228
      %p231 = scmp.ne.s32.totalorder %s216, %s230
      %p232 = scmp.eq.s32.totalorder %s38, 0
      %p233 = por %p231, %p232
      %s235 = sadd.s32 %s234, 1
      %p238 = scmp.eq.s32.totalorder %s32, 3
      %p239 = scmp.ne.s32.totalorder %s234, %s236
      %p240 = scmp.eq.s32.totalorder %s32, 0
      %p241 = por %p239, %p240
      %p242 = scmp.ne.s32.totalorder %s234, %s236
      %p243 = scmp.eq.s32.totalorder %s37, 3
      %p244 = por %p242, %p243
      %p245 = scmp.ne.s32.totalorder %s236, %s237
      %p246 = scmp.eq.s32.totalorder %s37, 0
      %p247 = por %p245, %p246
      %p248 = scmp.ne.s32.totalorder %s236, %s237
      %p249 = scmp.eq.s32.totalorder %s38, 3
      %p250 = por %p248, %p249
      %p252 = scmp.ne.s32.totalorder %s237, %s251
      %p253 = scmp.eq.s32.totalorder %s38, 0
      %p254 = por %p252, %p253
      %s256 = sadd.s32 %s255, 1
      %p259 = scmp.eq.s32.totalorder %s32, 3
      %p260 = scmp.ne.s32.totalorder %s255, %s257
      %p261 = scmp.eq.s32.totalorder %s32, 0
      %p262 = por %p260, %p261
      %p263 = scmp.ne.s32.totalorder %s255, %s257
      %p264 = scmp.eq.s32.totalorder %s37, 3
      %p265 = por %p263, %p264
      %p266 = scmp.ne.s32.totalorder %s257, %s258
      %p267 = scmp.eq.s32.totalorder %s37, 0
      %p268 = por %p266, %p267
      %p269 = scmp.ne.s32.totalorder %s257, %s258
      %p270 = scmp.eq.s32.totalorder %s38, 3
      %p271 = por %p269, %p270
      %p273 = scmp.ne.s32.totalorder %s258, %s272
      %p274 = scmp.eq.s32.totalorder %s38, 0
      %p275 = por %p273, %p274
      %s277 = sadd.s32 %s276, 1
      %p280 = scmp.eq.s32.totalorder %s32, 3
      %p281 = scmp.ne.s32.totalorder %s276, %s278
      %p282 = scmp.eq.s32.totalorder %s32, 0
      %p283 = por %p281, %p282
      %p284 = scmp.ne.s32.totalorder %s276, %s278
      %p285 = scmp.eq.s32.totalorder %s37, 3
      %p286 = por %p284, %p285
      %p287 = scmp.ne.s32.totalorder %s278, %s279
      %p288 = scmp.eq.s32.totalorder %s37, 0
      %p289 = por %p287, %p288
      %p290 = scmp.ne.s32.totalorder %s278, %s279
      %p291 = scmp.eq.s32.totalorder %s38, 3
      %p292 = por %p290, %p291
      %p294 = scmp.ne.s32.totalorder %s279, %s293
      %p295 = scmp.eq.s32.totalorder %s38, 0
      %p296 = por %p294, %p295
      %s298 = sadd.s32 %s297, 1
      %p301 = scmp.eq.s32.totalorder %s32, 3
      %p302 = scmp.ne.s32.totalorder %s297, %s299
      %p303 = scmp.eq.s32.totalorder %s32, 0
      %p304 = por %p302, %p303
      %p305 = scmp.ne.s32.totalorder %s297, %s299
      %p306 = scmp.eq.s32.totalorder %s37, 3
      %p307 = por %p305, %p306
      %p308 = scmp.ne.s32.totalorder %s299, %s300
      %p309 = scmp.eq.s32.totalorder %s37, 0
      %p310 = por %p308, %p309
      %p311 = scmp.ne.s32.totalorder %s299, %s300
      %p312 = scmp.eq.s32.totalorder %s38, 3
      %p313 = por %p311, %p312
      %p315 = scmp.ne.s32.totalorder %s300, %s314
      %p316 = scmp.eq.s32.totalorder %s38, 0
      %p317 = por %p315, %p316
      %s318 = ssub.s32 %s32, %s39
      %p319 = scmp.eq.s32.totalorder %s318, 0
      %s321 = sadd.s32 %s320, 1
      %s322 = scalar_select %p319, %s320, %s321
      %p325 = pneg %p319
      %p326 = scmp.eq.s32.totalorder %s32, 3
      %p327 = por %p325, %p326
      %p328 = scmp.ne.s32.totalorder %s320, %s323
      %p329 = scmp.eq.s32.totalorder %s32, 0
      %p330 = por %p328, %p329
      %p331 = scmp.ne.s32.totalorder %s320, %s323
      %p332 = scmp.eq.s32.totalorder %s37, 3
      %p333 = por %p331, %p332
      %p334 = scmp.ne.s32.totalorder %s323, %s324
      %p335 = scmp.eq.s32.totalorder %s37, 0
      %p336 = por %p334, %p335
      %p337 = scmp.ne.s32.totalorder %s323, %s324
      %p338 = scmp.eq.s32.totalorder %s38, 3
      %p339 = por %p337, %p338
      %p341 = scmp.ne.s32.totalorder %s324, %s340
      %p342 = scmp.eq.s32.totalorder %s38, 0
      %p343 = por %p341, %p342
      %s345 = sadd.s32 %s344, 1
      %p348 = scmp.eq.s32.totalorder %s32, 3
      %p349 = scmp.ne.s32.totalorder %s344, %s346
      %p350 = scmp.eq.s32.totalorder %s32, 0
      %p351 = por %p349, %p350
      %p352 = scmp.ne.s32.totalorder %s344, %s346
      %p353 = scmp.eq.s32.totalorder %s37, 3
      %p354 = por %p352, %p353
      %p355 = scmp.ne.s32.totalorder %s346, %s347
      %p356 = scmp.eq.s32.totalorder %s37, 0
      %p357 = por %p355, %p356
      %p358 = scmp.ne.s32.totalorder %s346, %s347
      %p359 = scmp.eq.s32.totalorder %s38, 3
      %p360 = por %p358, %p359
      %p362 = scmp.ne.s32.totalorder %s347, %s361
      %p363 = scmp.eq.s32.totalorder %s38, 0
      %p364 = por %p362, %p363
      %s366 = sadd.s32 %s365, 1
      %p369 = scmp.eq.s32.totalorder %s32, 3
      %p370 = scmp.ne.s32.totalorder %s365, %s367
      %p371 = scmp.eq.s32.totalorder %s32, 0
      %p372 = por %p370, %p371
      %p373 = scmp.ne.s32.totalorder %s365, %s367
      %p374 = scmp.eq.s32.totalorder %s37, 3
      %p375 = por %p373, %p374
      %p376 = scmp.ne.s32.totalorder %s367, %s368
      %p377 = scmp.eq.s32.totalorder %s37, 0
      %p378 = por %p376, %p377
      %p379 = scmp.ne.s32.totalorder %s367, %s368
      %p380 = scmp.eq.s32.totalorder %s38, 3
      %p381 = por %p379, %p380
      %p383 = scmp.ne.s32.totalorder %s368, %s382
      %p384 = scmp.eq.s32.totalorder %s38, 0
      %p385 = por %p383, %p384
      %p386 = scmp.le.s32.totalorder 1, %s32
      %p387 = scmp.lt.s32.totalorder %s32, 5
      %p388 = pnand %p386, %p387
      %p389 = pneg %p388
      // Predicated region
      $region9: #{tpu_custom_call.1} parent=5 // pred_check
        _
      $region10: #{tpu_custom_call.1} parent=5 // pred_check_branch
        %391 = sbr.rel (%p388) target = $region12
      $region11: #{tpu_custom_call.1} parent=5 // pred_region
        %s392 = ssub.s32 %s32, 1
        // Predicated region
        $region13: #{tpu_custom_call.1} parent=11 // pred_check
          %p393 = pneg %p53
        $region14: #{tpu_custom_call.1} parent=11 // pred_check_branch
          %395 = sbr.rel (%p393) target = $region16
        $region15: #{tpu_custom_call.1} parent=11 // pred_region
          %s397 = ssub.s32 2048, 2048
          %398 = vsyncadd [#allocation5], %s397
          %s399 = sshll.u32 [#allocation4], 4
          %s400 = int_to_ptr.vmem [resolvable:$true] %s399
          %405 = dma.hbm_to_vmem [thread:$0]  %s0, 2048, %s400, [#allocation5], 256, 256, 16
        $region16: #{tpu_custom_call.1} parent=11 // pred_fallthru
          _
        // Predicated region
        $region17: #{tpu_custom_call.1} parent=11 // pred_check
          %p406 = pneg %p74
        $region18: #{tpu_custom_call.1} parent=11 // pred_check_branch
          %408 = sbr.rel (%p406) target = $region20
        $region19: #{tpu_custom_call.1} parent=11 // pred_region
          %s410 = ssub.s32 128, 128
          %411 = vsyncadd [#allocation8], %s410
          %s413 = sshll.u32 [#allocation7], 4
          %s414 = int_to_ptr.vmem [resolvable:$true] %s413
          %416 = dma.hbm_to_vmem [thread:$0]  %s1, 128, %s414, [#allocation8]
        $region20: #{tpu_custom_call.1} parent=11 // pred_fallthru
          _
        // Predicated region
        $region21: #{tpu_custom_call.1} parent=11 // pred_check
          %p417 = pneg %p95
        $region22: #{tpu_custom_call.1} parent=11 // pred_check_branch
          %419 = sbr.rel (%p417) target = $region24
        $region23: #{tpu_custom_call.1} parent=11 // pred_region
          _
        $region24: #{tpu_custom_call.1} parent=11 // pred_fallthru
          _
        // Predicated region
        $region25: #{tpu_custom_call.1} parent=11 // pred_check
          %p420 = pneg %p142
        $region26: #{tpu_custom_call.1} parent=11 // pred_check_branch
          %422 = sbr.rel (%p420) target = $region28
        $region27: #{tpu_custom_call.1} parent=11 // pred_region
          _
        $region28: #{tpu_custom_call.1} parent=11 // pred_fallthru
          _
        // Predicated region
        $region29: #{tpu_custom_call.1} parent=11 // pred_check
          %p423 = pneg %p163
        $region30: #{tpu_custom_call.1} parent=11 // pred_check_branch
          %425 = sbr.rel (%p423) target = $region32
        $region31: #{tpu_custom_call.1} parent=11 // pred_region
          _
        $region32: #{tpu_custom_call.1} parent=11 // pred_fallthru
          _
        // Predicated region
        $region33: #{tpu_custom_call.1} parent=11 // pred_check
          %p426 = pneg %p184
        $region34: #{tpu_custom_call.1} parent=11 // pred_check_branch
          %428 = sbr.rel (%p426) target = $region36
        $region35: #{tpu_custom_call.1} parent=11 // pred_region
          _
        $region36: #{tpu_custom_call.1} parent=11 // pred_fallthru
          _
        // Predicated region
        $region37: #{tpu_custom_call.1} parent=11 // pred_check
          %p429 = pneg %p205
        $region38: #{tpu_custom_call.1} parent=11 // pred_check_branch
          %431 = sbr.rel (%p429) target = $region40
        $region39: #{tpu_custom_call.1} parent=11 // pred_region
          %s433 = ssub.s32 8192, 8192
          %434 = vsyncadd [#allocation8], %s433
          %s435 = sshll.u32 [#allocation10], 4
          %s436 = int_to_ptr.vmem [resolvable:$true] %s435
          %441 = dma.hbm_to_vmem [thread:$0]  %s7, 8192, %s436, [#allocation8], 256, 256, 16
        $region40: #{tpu_custom_call.1} parent=11 // pred_fallthru
          _
        // Predicated region
        $region41: #{tpu_custom_call.1} parent=11 // pred_check
          %p442 = pneg %p226
        $region42: #{tpu_custom_call.1} parent=11 // pred_check_branch
          %444 = sbr.rel (%p442) target = $region44
        $region43: #{tpu_custom_call.1} parent=11 // pred_region
          %s446 = ssub.s32 4096, 4096
          %447 = vsyncadd [#allocation12], %s446
          %s448 = sshll.u32 [#allocation11], 4
          %s449 = int_to_ptr.vmem [resolvable:$true] %s448
          %454 = dma.hbm_to_vmem [thread:$0]  %s8, 4096, %s449, [#allocation12], 256, 256, 16
        $region44: #{tpu_custom_call.1} parent=11 // pred_fallthru
          _
        // Predicated region
        $region45: #{tpu_custom_call.1} parent=11 // pred_check
          %p455 = pneg %p247
        $region46: #{tpu_custom_call.1} parent=11 // pred_check_branch
          %457 = sbr.rel (%p455) target = $region48
        $region47: #{tpu_custom_call.1} parent=11 // pred_region
          %s459 = ssub.s32 4096, 4096
          %460 = vsyncadd [#allocation12], %s459
          %s461 = sshll.u32 [#allocation13], 4
          %s462 = int_to_ptr.vmem [resolvable:$true] %s461
          %467 = dma.hbm_to_vmem [thread:$0]  %s9, 4096, %s462, [#allocation12], 256, 256, 16
        $region48: #{tpu_custom_call.1} parent=11 // pred_fallthru
          _
        // Predicated region
        $region49: #{tpu_custom_call.1} parent=11 // pred_check
          %p468 = pneg %p268
        $region50: #{tpu_custom_call.1} parent=11 // pred_check_branch
          %470 = sbr.rel (%p468) target = $region52
        $region51: #{tpu_custom_call.1} parent=11 // pred_region
          _
        $region52: #{tpu_custom_call.1} parent=11 // pred_fallthru
          _
        // Predicated region
        $region53: #{tpu_custom_call.1} parent=11 // pred_check
          %p471 = pneg %p289
        $region54: #{tpu_custom_call.1} parent=11 // pred_check_branch
          %473 = sbr.rel (%p471) target = $region56
        $region55: #{tpu_custom_call.1} parent=11 // pred_region
          %s475 = ssub.s32 2048, 2048
          %476 = vsyncadd [#allocation15], %s475
          %s477 = sshll.u32 [#allocation14], 4
          %s478 = int_to_ptr.vmem [resolvable:$true] %s477
          %483 = dma.hbm_to_vmem [thread:$0]  %s11, 2048, %s478, [#allocation15], 128, 128, 8
        $region56: #{tpu_custom_call.1} parent=11 // pred_fallthru
          _
        // Predicated region
        $region57: #{tpu_custom_call.1} parent=11 // pred_check
          %p484 = pneg %p310
        $region58: #{tpu_custom_call.1} parent=11 // pred_check_branch
          %486 = sbr.rel (%p484) target = $region60
        $region59: #{tpu_custom_call.1} parent=11 // pred_region
          _
        $region60: #{tpu_custom_call.1} parent=11 // pred_fallthru
          _
      $region12: #{tpu_custom_call.1} parent=5 // pred_fallthru
        _
      %p487 = scmp.lt.s32.totalorder %s32, 4
      // Predicated region
      $region61: #{tpu_custom_call.1} parent=5 // pred_check
        %p488 = pneg %p487
      $region62: #{tpu_custom_call.1} parent=5 // pred_check_branch
        %490 = sbr.rel (%p488) target = $region64
      $region63: #{tpu_custom_call.1} parent=5 // pred_region
        // Predicated region
        $region65: #{tpu_custom_call.1} parent=63 // pred_check
          %p491 = pneg %p115
        $region66: #{tpu_custom_call.1} parent=63 // pred_check_branch
          %493 = sbr.rel (%p491) target = $region68
        $region67: #{tpu_custom_call.1} parent=63 // pred_region
          %s494 = sand.u32 %s32, 1
          %s495 = scalar_lea.sflag [#allocation5], %s494
          %s496 = sand.u32 %s105, 1
          %s497 = smul.addr %s496, 4
          %s498 = scalar_lea.vmem [#allocation9], %s497
          %s500 = ssub.s32 64, 64
          %501 = vsyncadd %s495, %s500
          %s502 = smul.addr %s32, 64
          %s503 = scalar_lea.hbm %s3, %s502
          %s505 = sshll.u32 %s498, 4
          %s506 = int_to_ptr.vmem [resolvable:$true] %s505
          %508 = dma.hbm_to_vmem [thread:$0]  %s503, 64, %s506, %s495
        $region68: #{tpu_custom_call.1} parent=63 // pred_fallthru
          _
      $region64: #{tpu_custom_call.1} parent=5 // pred_fallthru
        _
      %p509 = scmp.le.s32.totalorder 1, %s32
      %p510 = scmp.lt.s32.totalorder %s32, 5
      %p511 = pnand %p509, %p510
      %p512 = pneg %p511
      // Predicated region
      $region69: #{tpu_custom_call.1} parent=5 // pred_check
        _
      $region70: #{tpu_custom_call.1} parent=5 // pred_check_branch
        %514 = sbr.rel (%p511) target = $region72
      $region71: #{tpu_custom_call.1} parent=5 // pred_region
        %s515 = ssub.s32 %s32, 1
        // Predicated region
        $region73: #{tpu_custom_call.1} parent=71 // pred_check
          %p516 = pneg %p53
        $region74: #{tpu_custom_call.1} parent=71 // pred_check_branch
          %518 = sbr.rel (%p516) target = $region76
        $region75: #{tpu_custom_call.1} parent=71 // pred_region
          %519 = dma.done [#allocation5], 2048
        $region76: #{tpu_custom_call.1} parent=71 // pred_fallthru
          _
        // Predicated region
        $region77: #{tpu_custom_call.1} parent=71 // pred_check
          %p520 = pneg %p74
        $region78: #{tpu_custom_call.1} parent=71 // pred_check_branch
          %522 = sbr.rel (%p520) target = $region80
        $region79: #{tpu_custom_call.1} parent=71 // pred_region
          %523 = dma.done [#allocation8], 128
        $region80: #{tpu_custom_call.1} parent=71 // pred_fallthru
          _
        %s524 = sand.u32 %s37, 1
        %s525 = scalar_lea.sflag [#allocation5], %s524
        %s526 = sand.u32 %s108, 1
        %s527 = smul.addr %s526, 4
        %s528 = scalar_lea.vmem [#allocation9], %s527
        // Predicated region
        $region81: #{tpu_custom_call.1} parent=71 // pred_check
          %p529 = pneg %p121
        $region82: #{tpu_custom_call.1} parent=71 // pred_check_branch
          %531 = sbr.rel (%p529) target = $region84
        $region83: #{tpu_custom_call.1} parent=71 // pred_region
          %532 = dma.done %s525, 64
        $region84: #{tpu_custom_call.1} parent=71 // pred_fallthru
          _
        // Predicated region
        $region85: #{tpu_custom_call.1} parent=71 // pred_check
          %p533 = pneg %p205
        $region86: #{tpu_custom_call.1} parent=71 // pred_check_branch
          %535 = sbr.rel (%p533) target = $region88
        $region87: #{tpu_custom_call.1} parent=71 // pred_region
          %536 = dma.done [#allocation8], 8192
        $region88: #{tpu_custom_call.1} parent=71 // pred_fallthru
          _
        // Predicated region
        $region89: #{tpu_custom_call.1} parent=71 // pred_check
          %p537 = pneg %p226
        $region90: #{tpu_custom_call.1} parent=71 // pred_check_branch
          %539 = sbr.rel (%p537) target = $region92
        $region91: #{tpu_custom_call.1} parent=71 // pred_region
          %540 = dma.done [#allocation12], 4096
        $region92: #{tpu_custom_call.1} parent=71 // pred_fallthru
          _
        // Predicated region
        $region93: #{tpu_custom_call.1} parent=71 // pred_check
          %p541 = pneg %p247
        $region94: #{tpu_custom_call.1} parent=71 // pred_check_branch
          %543 = sbr.rel (%p541) target = $region96
        $region95: #{tpu_custom_call.1} parent=71 // pred_region
          %544 = dma.done [#allocation12], 4096
        $region96: #{tpu_custom_call.1} parent=71 // pred_fallthru
          _
        // Predicated region
        $region97: #{tpu_custom_call.1} parent=71 // pred_check
          %p545 = pneg %p289
        $region98: #{tpu_custom_call.1} parent=71 // pred_check_branch
          %547 = sbr.rel (%p545) target = $region100
        $region99: #{tpu_custom_call.1} parent=71 // pred_region
          %548 = dma.done [#allocation15], 2048
        $region100: #{tpu_custom_call.1} parent=71 // pred_fallthru
          _
        %p549 = pneg %p53
        %p550 = pneg %p50
        %p551 = pneg %p74
        %p552 = pneg %p71
        %p553 = pneg %p95
        %p554 = pneg %p92
        %s555 = sand.u32 %s37, 1
        %s556 = scalar_lea.sflag [#allocation5], %s555
        %s557 = sand.u32 %s108, 1
        %s558 = smul.addr %s557, 4
        %s559 = scalar_lea.vmem [#allocation9], %s558
        %p560 = pneg %p121
        %p561 = pneg %p118
        %p562 = pneg %p142
        %p563 = pneg %p139
        %p564 = pneg %p163
        %p565 = pneg %p160
        %p566 = pneg %p184
        %p567 = pneg %p181
        %p568 = pneg %p205
        %p569 = pneg %p202
        %p570 = pneg %p226
        %p571 = pneg %p223
        %p572 = pneg %p247
        %p573 = pneg %p244
        %p574 = pneg %p268
        %p575 = pneg %p265
        %p576 = pneg %p289
        %p577 = pneg %p286
        %p578 = pneg %p310
        %p579 = pneg %p307
        %p580 = pneg %p336
        %p581 = pneg %p333
        %s582 = sand.u32 %s323, 1
        %s583 = scalar_lea.sflag [#allocation6], %s582
        %s584 = sand.u32 %s323, 1
        %s585 = smul.addr %s584, 16
        %s586 = scalar_lea.vmem [#allocation16], %s585
        %p587 = pneg %p357
        %p588 = pneg %p354
        %p589 = pneg %p378
        %p590 = pneg %p375
        %p592 = scmp.eq.s32.totalorder %s37, 0
        // Predicated region
        $region101: #{tpu_custom_call.1} parent=71 // pred_check
          %p593 = pneg %p592
        $region102: #{tpu_custom_call.1} parent=71 // pred_check_branch
          %595 = sbr.rel (%p593) target = $region104
        $region103: #{tpu_custom_call.1} parent=71 // pred_region
          %v596 = vld [vmem:[#allocation7] sm:$0xff]
          %597 = vst [vmem:[#allocation17] sm:$0xff] %v596
          %v598 = vld [vmem:[%s2] sm:$0xff]
          %599 = vst [vmem:[#allocation19] sm:$0xff] %v598
          %v600 = vld [vmem:[#allocation4] sm:$0xff]
          %v601 = vld [vmem:[#allocation4 + $0x8] sm:$0xff]
          %v602 = vld [vmem:[#allocation4 + $0x10] sm:$0xff]
          %v603 = vld [vmem:[#allocation4 + $0x18] sm:$0xff]
          %v604 = vld [vmem:[#allocation4 + $0x20] sm:$0xff]
          %v605 = vld [vmem:[#allocation4 + $0x28] sm:$0xff]
          %v606 = vld [vmem:[#allocation4 + $0x30] sm:$0xff]
          %v607 = vld [vmem:[#allocation4 + $0x38] sm:$0xff]
          %v608 = vld [vmem:[#allocation4 + $0x40] sm:$0xff]
          %v609 = vld [vmem:[#allocation4 + $0x48] sm:$0xff]
          %v610 = vld [vmem:[#allocation4 + $0x50] sm:$0xff]
          %v611 = vld [vmem:[#allocation4 + $0x58] sm:$0xff]
          %v612 = vld [vmem:[#allocation4 + $0x60] sm:$0xff]
          %v613 = vld [vmem:[#allocation4 + $0x68] sm:$0xff]
          %v614 = vld [vmem:[#allocation4 + $0x70] sm:$0xff]
          %v615 = vld [vmem:[#allocation4 + $0x78] sm:$0xff]
          %v616 = vld [vmem:[%s5] sm:$0x3]
          %v618 = vlaneseq
          %v619 = vshrl.u32 %v618, 7
          %v620 = vsub.s32 0, %v619
          %v621 = vrot.slane %v616, %v620
          %v622 = vlaneseq
          %v623 = vshrl.u32 %v622, 7
          %v624 = vsub.s32 1, %v623
          %v625 = vrot.slane %v616, %v624
          %v628 = vmul.f32 %v600, %v621
          %v629 = vmul.f32 %v601, %v625
          %v630 = vmul.f32 %v602, %v621
          %v631 = vmul.f32 %v603, %v625
          %v632 = vmul.f32 %v604, %v621
          %v633 = vmul.f32 %v605, %v625
          %v634 = vmul.f32 %v606, %v621
          %v635 = vmul.f32 %v607, %v625
          %v636 = vmul.f32 %v608, %v621
          %v637 = vmul.f32 %v609, %v625
          %v638 = vmul.f32 %v610, %v621
          %v639 = vmul.f32 %v611, %v625
          %v640 = vmul.f32 %v612, %v621
          %v641 = vmul.f32 %v613, %v625
          %v642 = vmul.f32 %v614, %v621
          %v643 = vmul.f32 %v615, %v625
          %v644 = vadd.f32 %v628, %v629
          %645 = vadd.xlane.f32.xlu0 %v644
          %v646 = vpop.xlane.xlu0 %645
          %v647 = vadd.f32 %v630, %v631
          %648 = vadd.xlane.f32.xlu0 %v647
          %v649 = vpop.xlane.xlu0 %648
          %v650 = vadd.f32 %v632, %v633
          %651 = vadd.xlane.f32.xlu0 %v650
          %v652 = vpop.xlane.xlu0 %651
          %v653 = vadd.f32 %v634, %v635
          %654 = vadd.xlane.f32.xlu0 %v653
          %v655 = vpop.xlane.xlu0 %654
          %v656 = vadd.f32 %v636, %v637
          %657 = vadd.xlane.f32.xlu0 %v656
          %v658 = vpop.xlane.xlu0 %657
          %v659 = vadd.f32 %v638, %v639
          %660 = vadd.xlane.f32.xlu0 %v659
          %v661 = vpop.xlane.xlu0 %660
          %v662 = vadd.f32 %v640, %v641
          %663 = vadd.xlane.f32.xlu0 %v662
          %v664 = vpop.xlane.xlu0 %663
          %v665 = vadd.f32 %v642, %v643
          %666 = vadd.xlane.f32.xlu0 %v665
          %v667 = vpop.xlane.xlu0 %666
          %v676 = vlaneseq
          %v677 = vand.u32 %v676, 127
          %v678 = vlaneseq
          %v679 = vshrl.u32 %v678, 7
          %v680 = vsub.s32 %v677, %v679
          %v681 = vrot.slane %v646, %v680
          %v682 = vlaneseq
          %v683 = vshrl.u32 %v682, 7
          %v684 = vsub.s32 %v677, %v683
          %v685 = vrot.slane %v649, %v684
          %v686 = vlaneseq
          %v687 = vshrl.u32 %v686, 7
          %v688 = vsub.s32 %v677, %v687
          %v689 = vrot.slane %v652, %v688
          %v690 = vlaneseq
          %v691 = vshrl.u32 %v690, 7
          %v692 = vsub.s32 %v677, %v691
          %v693 = vrot.slane %v655, %v692
          %v694 = vlaneseq
          %v695 = vshrl.u32 %v694, 7
          %v696 = vsub.s32 %v677, %v695
          %v697 = vrot.slane %v658, %v696
          %v698 = vlaneseq
          %v699 = vshrl.u32 %v698, 7
          %v700 = vsub.s32 %v677, %v699
          %v701 = vrot.slane %v661, %v700
          %v702 = vlaneseq
          %v703 = vshrl.u32 %v702, 7
          %v704 = vsub.s32 %v677, %v703
          %v705 = vrot.slane %v664, %v704
          %v706 = vlaneseq
          %v707 = vshrl.u32 %v706, 7
          %v708 = vsub.s32 %v677, %v707
          %v709 = vrot.slane %v667, %v708
          %vm710 = vcmask 1041409
          %v711 = vsel %vm710, %v685, %v681
          %vm712 = vcmask 1042434
          %v713 = vsel %vm712, %v689, %v711
          %vm714 = vcmask 1043459
          %v715 = vsel %vm714, %v693, %v713
          %vm716 = vcmask 1044484
          %v717 = vsel %vm716, %v697, %v715
          %vm718 = vcmask 1045509
          %v719 = vsel %vm718, %v701, %v717
          %vm720 = vcmask 1046534
          %v721 = vsel %vm720, %v705, %v719
          %vm722 = vcmask 1047559
          %v723 = vsel %vm722, %v709, %v721
          %vm725 = vcmask 64512
          %726 = vst.msk [vmem:[#allocation2] sm:$0xff] %vm725, %v723
        $region104: #{tpu_custom_call.1} parent=71 // pred_fallthru
          _
        %v727 = vld [vmem:[#allocation4] sm:$0xff]
        %v728 = vld [vmem:[#allocation4 + $0x8] sm:$0xff]
        %v729 = vld [vmem:[#allocation4 + $0x10] sm:$0xff]
        %v730 = vld [vmem:[#allocation4 + $0x18] sm:$0xff]
        %v731 = vld [vmem:[#allocation4 + $0x20] sm:$0xff]
        %v732 = vld [vmem:[#allocation4 + $0x28] sm:$0xff]
        %v733 = vld [vmem:[#allocation4 + $0x30] sm:$0xff]
        %v734 = vld [vmem:[#allocation4 + $0x38] sm:$0xff]
        %v735 = vld [vmem:[#allocation4 + $0x40] sm:$0xff]
        %v736 = vld [vmem:[#allocation4 + $0x48] sm:$0xff]
        %v737 = vld [vmem:[#allocation4 + $0x50] sm:$0xff]
        %v738 = vld [vmem:[#allocation4 + $0x58] sm:$0xff]
        %v739 = vld [vmem:[#allocation4 + $0x60] sm:$0xff]
        %v740 = vld [vmem:[#allocation4 + $0x68] sm:$0xff]
        %v741 = vld [vmem:[#allocation4 + $0x70] sm:$0xff]
        %v742 = vld [vmem:[#allocation4 + $0x78] sm:$0xff]
        %v743 = vld [vmem:[#allocation17] sm:$0xff]
        %v744 = vld [vmem:[#allocation19] sm:$0xff]
        %v745 = vld [vmem:[%s528] sm:$0xf]
        %v746 = vld [vmem:[%s4] sm:$0x1]
        %v748 = vlaneseq
        %v749 = vshrl.u32 %v748, 7
        %v750 = vsub.s32 0, %v749
        %v751 = vrot.slane %v746, %v750
        %v753 = vmul.f32 %v743, %v751
        %754 = vadd.xlane.f32.xlu0 %v753
        %v755 = vpop.xlane.xlu0 %754
        %v756 = vld [vmem:[#allocation2] sm:$0xff]
        %v757 = vadd.f32 %v756, %v755
        %v758 = vld [vmem:[#allocation3] sm:$0x1]
        %v760 = vlaneseq
        %v761 = vshrl.u32 %v760, 7
        %v762 = vsub.s32 0, %v761
        %v763 = vrot.slane %v758, %v762
        %764 = vset.pattern.permute.xlu0 0
        %765 = vperm.xlu0 %764, %v763
        %v766 = vpop.permute.xlu0 %765
        %v768 = vadd.f32 %v757, %v766
        %v769 = vmax.f32 %v768, 0.0
        %vm770 = vcmask 64512
        %v771 = vsel %vm770, %v769, -inf
        %772 = vmax.xlane.f32.xlu0 %v771
        %v773 = vpop.xlane.xlu0 %772
        %v774 = vsub.f32 %v769, %v773
        %v775 = vmul.f32 %v774, 1.442695
        %v776 = vpow.pop %v775
        %v777 = vsel %vm770, %v776, 0.0
        %778 = vadd.xlane.f32.xlu0 %v777
        %v779 = vpop.xlane.xlu0 %778
        %v780 = vrcp.pop %v779
        %v781 = vmul.f32 %v776, %v780
        %v782 = vlaneseq
        %v783 = vshrl.u32 %v782, 7
        %v784 = vsub.s32 0, %v783
        %v785 = vrot.slane %v781, %v784
        %787 = vbcast.lane.b32.xlu0 %v785, 256
        %v788 = vpop.permute.xlu0 %787
        %v789 = vlaneseq
        %v790 = vshrl.u32 %v789, 7
        %v791 = vsub.s32 1, %v790
        %v792 = vrot.slane %v781, %v791
        %794 = vbcast.lane.b32.xlu0 %v792, 256
        %v795 = vpop.permute.xlu0 %794
        %v796 = vlaneseq
        %v797 = vshrl.u32 %v796, 7
        %v798 = vsub.s32 2, %v797
        %v799 = vrot.slane %v781, %v798
        %801 = vbcast.lane.b32.xlu0 %v799, 256
        %v802 = vpop.permute.xlu0 %801
        %v803 = vlaneseq
        %v804 = vshrl.u32 %v803, 7
        %v805 = vsub.s32 3, %v804
        %v806 = vrot.slane %v781, %v805
        %808 = vbcast.lane.b32.xlu0 %v806, 256
        %v809 = vpop.permute.xlu0 %808
        %v810 = vlaneseq
        %v811 = vshrl.u32 %v810, 7
        %v812 = vsub.s32 4, %v811
        %v813 = vrot.slane %v781, %v812
        %815 = vbcast.lane.b32.xlu0 %v813, 256
        %v816 = vpop.permute.xlu0 %815
        %v817 = vlaneseq
        %v818 = vshrl.u32 %v817, 7
        %v819 = vsub.s32 5, %v818
        %v820 = vrot.slane %v781, %v819
        %822 = vbcast.lane.b32.xlu0 %v820, 256
        %v823 = vpop.permute.xlu0 %822
        %v824 = vlaneseq
        %v825 = vshrl.u32 %v824, 7
        %v826 = vsub.s32 6, %v825
        %v827 = vrot.slane %v781, %v826
        %829 = vbcast.lane.b32.xlu0 %v827, 256
        %v830 = vpop.permute.xlu0 %829
        %v831 = vlaneseq
        %v832 = vshrl.u32 %v831, 7
        %v833 = vsub.s32 7, %v832
        %v834 = vrot.slane %v781, %v833
        %836 = vbcast.lane.b32.xlu0 %v834, 256
        %v837 = vpop.permute.xlu0 %836
        %v838 = vmul.f32 %v788, %v727
        %v839 = vmul.f32 %v788, %v728
        %v840 = vmul.f32 %v795, %v729
        %v841 = vmul.f32 %v795, %v730
        %v842 = vmul.f32 %v802, %v731
        %v843 = vmul.f32 %v802, %v732
        %v844 = vmul.f32 %v809, %v733
        %v845 = vmul.f32 %v809, %v734
        %v846 = vmul.f32 %v816, %v735
        %v847 = vmul.f32 %v816, %v736
        %v848 = vmul.f32 %v823, %v737
        %v849 = vmul.f32 %v823, %v738
        %v850 = vmul.f32 %v830, %v739
        %v851 = vmul.f32 %v830, %v740
        %v852 = vmul.f32 %v837, %v741
        %v853 = vmul.f32 %v837, %v742
        %v854 = vrot.slane %v838, 4
        %v855 = vadd.f32 %v838, %v854
        %v856 = vrot.slane %v855, 2
        %v857 = vadd.f32 %v855, %v856
        %v858 = vrot.slane %v857, 1
        %v859 = vadd.f32 %v857, %v858
        %v860 = vrot.slane %v839, 4
        %v861 = vadd.f32 %v839, %v860
        %v862 = vrot.slane %v861, 2
        %v863 = vadd.f32 %v861, %v862
        %v864 = vrot.slane %v863, 1
        %v865 = vadd.f32 %v863, %v864
        %v866 = vrot.slane %v840, 4
        %v867 = vadd.f32 %v840, %v866
        %v868 = vrot.slane %v867, 2
        %v869 = vadd.f32 %v867, %v868
        %v870 = vrot.slane %v869, 1
        %v871 = vadd.f32 %v869, %v870
        %v872 = vrot.slane %v841, 4
        %v873 = vadd.f32 %v841, %v872
        %v874 = vrot.slane %v873, 2
        %v875 = vadd.f32 %v873, %v874
        %v876 = vrot.slane %v875, 1
        %v877 = vadd.f32 %v875, %v876
        %v878 = vrot.slane %v842, 4
        %v879 = vadd.f32 %v842, %v878
        %v880 = vrot.slane %v879, 2
        %v881 = vadd.f32 %v879, %v880
        %v882 = vrot.slane %v881, 1
        %v883 = vadd.f32 %v881, %v882
        %v884 = vrot.slane %v843, 4
        %v885 = vadd.f32 %v843, %v884
        %v886 = vrot.slane %v885, 2
        %v887 = vadd.f32 %v885, %v886
        %v888 = vrot.slane %v887, 1
        %v889 = vadd.f32 %v887, %v888
        %v890 = vrot.slane %v844, 4
        %v891 = vadd.f32 %v844, %v890
        %v892 = vrot.slane %v891, 2
        %v893 = vadd.f32 %v891, %v892
        %v894 = vrot.slane %v893, 1
        %v895 = vadd.f32 %v893, %v894
        %v896 = vrot.slane %v845, 4
        %v897 = vadd.f32 %v845, %v896
        %v898 = vrot.slane %v897, 2
        %v899 = vadd.f32 %v897, %v898
        %v900 = vrot.slane %v899, 1
        %v901 = vadd.f32 %v899, %v900
        %v902 = vrot.slane %v846, 4
        %v903 = vadd.f32 %v846, %v902
        %v904 = vrot.slane %v903, 2
        %v905 = vadd.f32 %v903, %v904
        %v906 = vrot.slane %v905, 1
        %v907 = vadd.f32 %v905, %v906
        %v908 = vrot.slane %v847, 4
        %v909 = vadd.f32 %v847, %v908
        %v910 = vrot.slane %v909, 2
        %v911 = vadd.f32 %v909, %v910
        %v912 = vrot.slane %v911, 1
        %v913 = vadd.f32 %v911, %v912
        %v914 = vrot.slane %v848, 4
        %v915 = vadd.f32 %v848, %v914
        %v916 = vrot.slane %v915, 2
        %v917 = vadd.f32 %v915, %v916
        %v918 = vrot.slane %v917, 1
        %v919 = vadd.f32 %v917, %v918
        %v920 = vrot.slane %v849, 4
        %v921 = vadd.f32 %v849, %v920
        %v922 = vrot.slane %v921, 2
        %v923 = vadd.f32 %v921, %v922
        %v924 = vrot.slane %v923, 1
        %v925 = vadd.f32 %v923, %v924
        %v926 = vrot.slane %v850, 4
        %v927 = vadd.f32 %v850, %v926
        %v928 = vrot.slane %v927, 2
        %v929 = vadd.f32 %v927, %v928
        %v930 = vrot.slane %v929, 1
        %v931 = vadd.f32 %v929, %v930
        %v932 = vrot.slane %v851, 4
        %v933 = vadd.f32 %v851, %v932
        %v934 = vrot.slane %v933, 2
        %v935 = vadd.f32 %v933, %v934
        %v936 = vrot.slane %v935, 1
        %v937 = vadd.f32 %v935, %v936
        %v938 = vrot.slane %v852, 4
        %v939 = vadd.f32 %v852, %v938
        %v940 = vrot.slane %v939, 2
        %v941 = vadd.f32 %v939, %v940
        %v942 = vrot.slane %v941, 1
        %v943 = vadd.f32 %v941, %v942
        %v944 = vrot.slane %v853, 4
        %v945 = vadd.f32 %v853, %v944
        %v946 = vrot.slane %v945, 2
        %v947 = vadd.f32 %v945, %v946
        %v948 = vrot.slane %v947, 1
        %v949 = vadd.f32 %v947, %v948
        %v950 = vpack.c.bf16 %v859, %v859
        %v951 = vpack.c.bf16 %v865, %v865
        %v952 = vpack.c.bf16 %v871, %v871
        %v953 = vpack.c.bf16 %v877, %v877
        %v954 = vpack.c.bf16 %v883, %v883
        %v955 = vpack.c.bf16 %v889, %v889
        %v956 = vpack.c.bf16 %v895, %v895
        %v957 = vpack.c.bf16 %v901, %v901
        %v958 = vpack.c.bf16 %v907, %v907
        %v959 = vpack.c.bf16 %v913, %v913
        %v960 = vpack.c.bf16 %v919, %v919
        %v961 = vpack.c.bf16 %v925, %v925
        %v962 = vpack.c.bf16 %v931, %v931
        %v963 = vpack.c.bf16 %v937, %v937
        %v964 = vpack.c.bf16 %v943, %v943
        %v965 = vpack.c.bf16 %v949, %v949
        %v966 = vld [vmem:[#allocation10] sm:$0xff]
        %v967 = vld [vmem:[#allocation10 + $0x8] sm:$0xff]
        %v968 = vld [vmem:[#allocation10 + $0x10] sm:$0xff]
        %v969 = vld [vmem:[#allocation10 + $0x18] sm:$0xff]
        %v970 = vld [vmem:[#allocation10 + $0x20] sm:$0xff]
        %v971 = vld [vmem:[#allocation10 + $0x28] sm:$0xff]
        %v972 = vld [vmem:[#allocation10 + $0x30] sm:$0xff]
        %v973 = vld [vmem:[#allocation10 + $0x38] sm:$0xff]
        %v974 = vld [vmem:[#allocation10 + $0x40] sm:$0xff]
        %v975 = vld [vmem:[#allocation10 + $0x48] sm:$0xff]
        %v976 = vld [vmem:[#allocation10 + $0x50] sm:$0xff]
        %v977 = vld [vmem:[#allocation10 + $0x58] sm:$0xff]
        %v978 = vld [vmem:[#allocation10 + $0x60] sm:$0xff]
        %v979 = vld [vmem:[#allocation10 + $0x68] sm:$0xff]
        %v980 = vld [vmem:[#allocation10 + $0x70] sm:$0xff]
        %v981 = vld [vmem:[#allocation10 + $0x78] sm:$0xff]
        %v982 = vld [vmem:[#allocation10 + $0x80] sm:$0xff]
        %v983 = vld [vmem:[#allocation10 + $0x88] sm:$0xff]
        %v984 = vld [vmem:[#allocation10 + $0x90] sm:$0xff]
        %v985 = vld [vmem:[#allocation10 + $0x98] sm:$0xff]
        %v986 = vld [vmem:[#allocation10 + $0xa0] sm:$0xff]
        %v987 = vld [vmem:[#allocation10 + $0xa8] sm:$0xff]
        %v988 = vld [vmem:[#allocation10 + $0xb0] sm:$0xff]
        %v989 = vld [vmem:[#allocation10 + $0xb8] sm:$0xff]
        %v990 = vld [vmem:[#allocation10 + $0xc0] sm:$0xff]
        %v991 = vld [vmem:[#allocation10 + $0xc8] sm:$0xff]
        %v992 = vld [vmem:[#allocation10 + $0xd0] sm:$0xff]
        %v993 = vld [vmem:[#allocation10 + $0xd8] sm:$0xff]
        %v994 = vld [vmem:[#allocation10 + $0xe0] sm:$0xff]
        %v995 = vld [vmem:[#allocation10 + $0xe8] sm:$0xff]
        %v996 = vld [vmem:[#allocation10 + $0xf0] sm:$0xff]
        %v997 = vld [vmem:[#allocation10 + $0xf8] sm:$0xff]
        %v998 = vld [vmem:[#allocation10 + $0x100] sm:$0xff]
        %v999 = vld [vmem:[#allocation10 + $0x108] sm:$0xff]
        %v1000 = vld [vmem:[#allocation10 + $0x110] sm:$0xff]
        %v1001 = vld [vmem:[#allocation10 + $0x118] sm:$0xff]
        %v1002 = vld [vmem:[#allocation10 + $0x120] sm:$0xff]
        %v1003 = vld [vmem:[#allocation10 + $0x128] sm:$0xff]
        %v1004 = vld [vmem:[#allocation10 + $0x130] sm:$0xff]
        %v1005 = vld [vmem:[#allocation10 + $0x138] sm:$0xff]
        %v1006 = vld [vmem:[#allocation10 + $0x140] sm:$0xff]
        %v1007 = vld [vmem:[#allocation10 + $0x148] sm:$0xff]
        %v1008 = vld [vmem:[#allocation10 + $0x150] sm:$0xff]
        %v1009 = vld [vmem:[#allocation10 + $0x158] sm:$0xff]
        %v1010 = vld [vmem:[#allocation10 + $0x160] sm:$0xff]
        %v1011 = vld [vmem:[#allocation10 + $0x168] sm:$0xff]
        %v1012 = vld [vmem:[#allocation10 + $0x170] sm:$0xff]
        %v1013 = vld [vmem:[#allocation10 + $0x178] sm:$0xff]
        %v1014 = vld [vmem:[#allocation10 + $0x180] sm:$0xff]
        %v1015 = vld [vmem:[#allocation10 + $0x188] sm:$0xff]
        %v1016 = vld [vmem:[#allocation10 + $0x190] sm:$0xff]
        %v1017 = vld [vmem:[#allocation10 + $0x198] sm:$0xff]
        %v1018 = vld [vmem:[#allocation10 + $0x1a0] sm:$0xff]
        %v1019 = vld [vmem:[#allocation10 + $0x1a8] sm:$0xff]
        %v1020 = vld [vmem:[#allocation10 + $0x1b0] sm:$0xff]
        %v1021 = vld [vmem:[#allocation10 + $0x1b8] sm:$0xff]
        %v1022 = vld [vmem:[#allocation10 + $0x1c0] sm:$0xff]
        %v1023 = vld [vmem:[#allocation10 + $0x1c8] sm:$0xff]
        %v1024 = vld [vmem:[#allocation10 + $0x1d0] sm:$0xff]
        %v1025 = vld [vmem:[#allocation10 + $0x1d8] sm:$0xff]
        %v1026 = vld [vmem:[#allocation10 + $0x1e0] sm:$0xff]
        %v1027 = vld [vmem:[#allocation10 + $0x1e8] sm:$0xff]
        %v1028 = vld [vmem:[#allocation10 + $0x1f0] sm:$0xff]
        %v1029 = vld [vmem:[#allocation10 + $0x1f8] sm:$0xff]
        %v1030 = vld [vmem:[#allocation11] sm:$0xff]
        %v1031 = vld [vmem:[#allocation11 + $0x8] sm:$0xff]
        %v1032 = vld [vmem:[#allocation11 + $0x10] sm:$0xff]
        %v1033 = vld [vmem:[#allocation11 + $0x18] sm:$0xff]
        %v1034 = vld [vmem:[#allocation11 + $0x20] sm:$0xff]
        %v1035 = vld [vmem:[#allocation11 + $0x28] sm:$0xff]
        %v1036 = vld [vmem:[#allocation11 + $0x30] sm:$0xff]
        %v1037 = vld [vmem:[#allocation11 + $0x38] sm:$0xff]
        %v1038 = vld [vmem:[#allocation11 + $0x40] sm:$0xff]
        %v1039 = vld [vmem:[#allocation11 + $0x48] sm:$0xff]
        %v1040 = vld [vmem:[#allocation11 + $0x50] sm:$0xff]
        %v1041 = vld [vmem:[#allocation11 + $0x58] sm:$0xff]
        %v1042 = vld [vmem:[#allocation11 + $0x60] sm:$0xff]
        %v1043 = vld [vmem:[#allocation11 + $0x68] sm:$0xff]
        %v1044 = vld [vmem:[#allocation11 + $0x70] sm:$0xff]
        %v1045 = vld [vmem:[#allocation11 + $0x78] sm:$0xff]
        %v1046 = vld [vmem:[#allocation11 + $0x80] sm:$0xff]
        %v1047 = vld [vmem:[#allocation11 + $0x88] sm:$0xff]
        %v1048 = vld [vmem:[#allocation11 + $0x90] sm:$0xff]
        %v1049 = vld [vmem:[#allocation11 + $0x98] sm:$0xff]
        %v1050 = vld [vmem:[#allocation11 + $0xa0] sm:$0xff]
        %v1051 = vld [vmem:[#allocation11 + $0xa8] sm:$0xff]
        %v1052 = vld [vmem:[#allocation11 + $0xb0] sm:$0xff]
        %v1053 = vld [vmem:[#allocation11 + $0xb8] sm:$0xff]
        %v1054 = vld [vmem:[#allocation11 + $0xc0] sm:$0xff]
        %v1055 = vld [vmem:[#allocation11 + $0xc8] sm:$0xff]
        %v1056 = vld [vmem:[#allocation11 + $0xd0] sm:$0xff]
        %v1057 = vld [vmem:[#allocation11 + $0xd8] sm:$0xff]
        %v1058 = vld [vmem:[#allocation11 + $0xe0] sm:$0xff]
        %v1059 = vld [vmem:[#allocation11 + $0xe8] sm:$0xff]
        %v1060 = vld [vmem:[#allocation11 + $0xf0] sm:$0xff]
        %v1061 = vld [vmem:[#allocation11 + $0xf8] sm:$0xff]
        %v1094 = vunpack.c.l.b16 %v1030
        %v1095 = vunpack.c.h.b16 %v1030
        %v1096 = vunpack.c.l.b16 %v1031
        %v1097 = vunpack.c.h.b16 %v1031
        %v1098 = vunpack.c.l.b16 %v1032
        %v1099 = vunpack.c.h.b16 %v1032
        %v1100 = vunpack.c.l.b16 %v1033
        %v1101 = vunpack.c.h.b16 %v1033
        %v1102 = vunpack.c.l.b16 %v1034
        %v1103 = vunpack.c.h.b16 %v1034
        %v1104 = vunpack.c.l.b16 %v1035
        %v1105 = vunpack.c.h.b16 %v1035
        %v1106 = vunpack.c.l.b16 %v1036
        %v1107 = vunpack.c.h.b16 %v1036
        %v1108 = vunpack.c.l.b16 %v1037
        %v1109 = vunpack.c.h.b16 %v1037
        %v1110 = vunpack.c.l.b16 %v1038
        %v1111 = vunpack.c.h.b16 %v1038
        %v1112 = vunpack.c.l.b16 %v1039
        %v1113 = vunpack.c.h.b16 %v1039
        %v1114 = vunpack.c.l.b16 %v1040
        %v1115 = vunpack.c.h.b16 %v1040
        %v1116 = vunpack.c.l.b16 %v1041
        %v1117 = vunpack.c.h.b16 %v1041
        %v1118 = vunpack.c.l.b16 %v1042
        %v1119 = vunpack.c.h.b16 %v1042
        %v1120 = vunpack.c.l.b16 %v1043
        %v1121 = vunpack.c.h.b16 %v1043
        %v1122 = vunpack.c.l.b16 %v1044
        %v1123 = vunpack.c.h.b16 %v1044
        %v1124 = vunpack.c.l.b16 %v1045
        %v1125 = vunpack.c.h.b16 %v1045
        %v1126 = vunpack.c.l.b16 %v1046
        %v1127 = vunpack.c.h.b16 %v1046
        %v1128 = vunpack.c.l.b16 %v1047
        %v1129 = vunpack.c.h.b16 %v1047
        %v1130 = vunpack.c.l.b16 %v1048
        %v1131 = vunpack.c.h.b16 %v1048
        %v1132 = vunpack.c.l.b16 %v1049
        %v1133 = vunpack.c.h.b16 %v1049
        %v1134 = vunpack.c.l.b16 %v1050
        %v1135 = vunpack.c.h.b16 %v1050
        %v1136 = vunpack.c.l.b16 %v1051
        %v1137 = vunpack.c.h.b16 %v1051
        %v1138 = vunpack.c.l.b16 %v1052
        %v1139 = vunpack.c.h.b16 %v1052
        %v1140 = vunpack.c.l.b16 %v1053
        %v1141 = vunpack.c.h.b16 %v1053
        %v1142 = vunpack.c.l.b16 %v1054
        %v1143 = vunpack.c.h.b16 %v1054
        %v1144 = vunpack.c.l.b16 %v1055
        %v1145 = vunpack.c.h.b16 %v1055
        %v1146 = vunpack.c.l.b16 %v1056
        %v1147 = vunpack.c.h.b16 %v1056
        %v1148 = vunpack.c.l.b16 %v1057
        %v1149 = vunpack.c.h.b16 %v1057
        %v1150 = vunpack.c.l.b16 %v1058
        %v1151 = vunpack.c.h.b16 %v1058
        %v1152 = vunpack.c.l.b16 %v1059
        %v1153 = vunpack.c.h.b16 %v1059
        %v1154 = vunpack.c.l.b16 %v1060
        %v1155 = vunpack.c.h.b16 %v1060
        %v1156 = vunpack.c.l.b16 %v1061
        %v1157 = vunpack.c.h.b16 %v1061
        %v1158 = vpack.c.b16 %v1098, %v1094
        %v1159 = vpack.c.b16 %v1099, %v1095
        %v1160 = vpack.c.b16 %v1100, %v1096
        %v1161 = vpack.c.b16 %v1101, %v1097
        %v1162 = vpack.c.b16 %v1106, %v1102
        %v1163 = vpack.c.b16 %v1107, %v1103
        %v1164 = vpack.c.b16 %v1108, %v1104
        %v1165 = vpack.c.b16 %v1109, %v1105
        %v1166 = vpack.c.b16 %v1114, %v1110
        %v1167 = vpack.c.b16 %v1115, %v1111
        %v1168 = vpack.c.b16 %v1116, %v1112
        %v1169 = vpack.c.b16 %v1117, %v1113
        %v1170 = vpack.c.b16 %v1122, %v1118
        %v1171 = vpack.c.b16 %v1123, %v1119
        %v1172 = vpack.c.b16 %v1124, %v1120
        %v1173 = vpack.c.b16 %v1125, %v1121
        %v1174 = vpack.c.b16 %v1130, %v1126
        %v1175 = vpack.c.b16 %v1131, %v1127
        %v1176 = vpack.c.b16 %v1132, %v1128
        %v1177 = vpack.c.b16 %v1133, %v1129
        %v1178 = vpack.c.b16 %v1138, %v1134
        %v1179 = vpack.c.b16 %v1139, %v1135
        %v1180 = vpack.c.b16 %v1140, %v1136
        %v1181 = vpack.c.b16 %v1141, %v1137
        %v1182 = vpack.c.b16 %v1146, %v1142
        %v1183 = vpack.c.b16 %v1147, %v1143
        %v1184 = vpack.c.b16 %v1148, %v1144
        %v1185 = vpack.c.b16 %v1149, %v1145
        %v1186 = vpack.c.b16 %v1154, %v1150
        %v1187 = vpack.c.b16 %v1155, %v1151
        %v1188 = vpack.c.b16 %v1156, %v1152
        %v1189 = vpack.c.b16 %v1157, %v1153
        %1222 = vmatprep.subr.bf16.mxu0 %v1159
        %1223 = vmatpush1.bf16.msra.mxu0 %v1158
        %1224 = vmatprep.subr.bf16.mxu0 %v1163
        %1225 = vmatpush1.bf16.msra.mxu0 %v1162
        %1226 = vmatprep.subr.bf16.mxu0 %v1167
        %1227 = vmatpush1.bf16.msra.mxu0 %v1166
        %1228 = vmatprep.subr.bf16.mxu0 %v1171
        %1229 = vmatpush1.bf16.msra.mxu0 %v1170
        %1230 = vmatprep.subr.bf16.mxu0 %v1175
        %1231 = vmatpush1.bf16.msra.mxu0 %v1174
        %1232 = vmatprep.subr.bf16.mxu0 %v1179
        %1233 = vmatpush1.bf16.msra.mxu0 %v1178
        %1234 = vmatprep.subr.bf16.mxu0 %v1183
        %1235 = vmatpush1.bf16.msra.mxu0 %v1182
        %1236 = vmatprep.subr.bf16.mxu0 %v1187
        %1237 = vmatpush1.bf16.msra.mxu0 %v1186
        %1238 = vmatprep.subr.bf16.mxu0 0
        %1239 = vmatpush1.bf16.msra.mxu0 0
        %1240 = vmatprep.subr.bf16.mxu0 0
        %1241 = vmatpush1.bf16.msra.mxu0 0
        %1242 = vmatprep.subr.bf16.mxu0 0
        %1243 = vmatpush1.bf16.msra.mxu0 0
        %1244 = vmatprep.subr.bf16.mxu0 0
        %1245 = vmatpush1.bf16.msra.mxu0 0
        %1246 = vmatprep.subr.bf16.mxu0 0
        %1247 = vmatpush1.bf16.msra.mxu0 0
        %1248 = vmatprep.subr.bf16.mxu0 0
        %1249 = vmatpush1.bf16.msra.mxu0 0
        %1250 = vmatprep.subr.bf16.mxu0 0
        %1251 = vmatpush1.bf16.msra.mxu0 0
        %1252 = vmatprep.subr.bf16.mxu0 0
        %1253 = vmatpush1.bf16.msra.mxu0 0
        %1254 = vmatprep.mubr.bf16.mxu0 0
        %1255 = vmatmul.mubr.bf16.gmra.mrb[0].mxu0 %v745
        %v1256 = vpop.f32.mrb[0].mxu0
        %v1257 = vadd.f32 0.0, %v1256
        %v1258 = vpop.f32.mrb[0].mxu0
        %v1259 = vadd.f32 0.0, %v1258
        %v1260 = vpop.f32.mrb[0].mxu0
        %v1261 = vpop.f32.mrb[0].mxu0
        %1262 = vdwg.mxu0
        %1263 = vmatprep.subr.bf16.mxu0 %v1161
        %1264 = vmatpush1.bf16.msra.mxu0 %v1160
        %1265 = vmatprep.subr.bf16.mxu0 %v1165
        %1266 = vmatpush1.bf16.msra.mxu0 %v1164
        %1267 = vmatprep.subr.bf16.mxu0 %v1169
        %1268 = vmatpush1.bf16.msra.mxu0 %v1168
        %1269 = vmatprep.subr.bf16.mxu0 %v1173
        %1270 = vmatpush1.bf16.msra.mxu0 %v1172
        %1271 = vmatprep.subr.bf16.mxu0 %v1177
        %1272 = vmatpush1.bf16.msra.mxu0 %v1176
        %1273 = vmatprep.subr.bf16.mxu0 %v1181
        %1274 = vmatpush1.bf16.msra.mxu0 %v1180
        %1275 = vmatprep.subr.bf16.mxu0 %v1185
        %1276 = vmatpush1.bf16.msra.mxu0 %v1184
        %1277 = vmatprep.subr.bf16.mxu0 %v1189
        %1278 = vmatpush1.bf16.msra.mxu0 %v1188
        %1279 = vmatprep.subr.bf16.mxu0 0
        %1280 = vmatpush1.bf16.msra.mxu0 0
        %1281 = vmatprep.subr.bf16.mxu0 0
        %1282 = vmatpush1.bf16.msra.mxu0 0
        %1283 = vmatprep.subr.bf16.mxu0 0
        %1284 = vmatpush1.bf16.msra.mxu0 0
        %1285 = vmatprep.subr.bf16.mxu0 0
        %1286 = vmatpush1.bf16.msra.mxu0 0
        %1287 = vmatprep.subr.bf16.mxu0 0
        %1288 = vmatpush1.bf16.msra.mxu0 0
        %1289 = vmatprep.subr.bf16.mxu0 0
        %1290 = vmatpush1.bf16.msra.mxu0 0
        %1291 = vmatprep.subr.bf16.mxu0 0
        %1292 = vmatpush1.bf16.msra.mxu0 0
        %1293 = vmatprep.subr.bf16.mxu0 0
        %1294 = vmatpush1.bf16.msra.mxu0 0
        %1295 = vmatprep.mubr.bf16.mxu0 0
        %1296 = vmatmul.mubr.bf16.gmra.mrb[0].mxu0 %v745
        %v1297 = vpop.f32.mrb[0].mxu0
        %v1298 = vadd.f32 0.0, %v1297
        %v1299 = vpop.f32.mrb[0].mxu0
        %v1300 = vadd.f32 0.0, %v1299
        %v1301 = vpop.f32.mrb[0].mxu0
        %v1302 = vpop.f32.mrb[0].mxu0
        %1303 = vdwg.mxu0
        %v1320 = vunpack.c.l.b16 %v950
        %v1321 = vunpack.c.l.b16 %v951
        %v1322 = vunpack.c.l.b16 %v952
        %v1323 = vunpack.c.l.b16 %v953
        %v1324 = vunpack.c.l.b16 %v954
        %v1325 = vunpack.c.l.b16 %v955
        %v1326 = vunpack.c.l.b16 %v956
        %v1327 = vunpack.c.l.b16 %v957
        %v1328 = vunpack.c.l.b16 %v958
        %v1329 = vunpack.c.l.b16 %v959
        %v1330 = vunpack.c.l.b16 %v960
        %v1331 = vunpack.c.l.b16 %v961
        %v1332 = vunpack.c.l.b16 %v962
        %v1333 = vunpack.c.l.b16 %v963
        %v1334 = vunpack.c.l.b16 %v964
        %v1335 = vunpack.c.l.b16 %v965
        %vm1336 = vcmask 1041409
        %v1337 = vsel %vm1336, %v1322, %v1320
        %vm1338 = vcmask 1042434
        %v1339 = vsel %vm1338, %v1324, %v1337
        %vm1340 = vcmask 1043459
        %v1341 = vsel %vm1340, %v1326, %v1339
        %vm1342 = vcmask 1044484
        %v1343 = vsel %vm1342, %v1328, %v1341
        %vm1344 = vcmask 1045509
        %v1345 = vsel %vm1344, %v1330, %v1343
        %vm1346 = vcmask 1046534
        %v1347 = vsel %vm1346, %v1332, %v1345
        %vm1348 = vcmask 1047559
        %v1349 = vsel %vm1348, %v1334, %v1347
        %v1350 = vsel %vm1336, %v1323, %v1321
        %v1351 = vsel %vm1338, %v1325, %v1350
        %v1352 = vsel %vm1340, %v1327, %v1351
        %v1353 = vsel %vm1342, %v1329, %v1352
        %v1354 = vsel %vm1344, %v1331, %v1353
        %v1355 = vsel %vm1346, %v1333, %v1354
        %v1356 = vsel %vm1348, %v1335, %v1355
        %v1357 = vpack.c.b16 %v1349, %v1349
        %v1358 = vpack.c.b16 %v1356, %v1356
        %v1425 = vunpack.c.l.b16 %v966
        %v1426 = vunpack.c.h.b16 %v966
        %v1427 = vunpack.c.l.b16 %v967
        %v1428 = vunpack.c.h.b16 %v967
        %v1429 = vunpack.c.l.b16 %v968
        %v1430 = vunpack.c.h.b16 %v968
        %v1431 = vunpack.c.l.b16 %v969
        %v1432 = vunpack.c.h.b16 %v969
        %v1433 = vunpack.c.l.b16 %v970
        %v1434 = vunpack.c.h.b16 %v970
        %v1435 = vunpack.c.l.b16 %v971
        %v1436 = vunpack.c.h.b16 %v971
        %v1437 = vunpack.c.l.b16 %v972
        %v1438 = vunpack.c.h.b16 %v972
        %v1439 = vunpack.c.l.b16 %v973
        %v1440 = vunpack.c.h.b16 %v973
        %v1441 = vunpack.c.l.b16 %v974
        %v1442 = vunpack.c.h.b16 %v974
        %v1443 = vunpack.c.l.b16 %v975
        %v1444 = vunpack.c.h.b16 %v975
        %v1445 = vunpack.c.l.b16 %v976
        %v1446 = vunpack.c.h.b16 %v976
        %v1447 = vunpack.c.l.b16 %v977
        %v1448 = vunpack.c.h.b16 %v977
        %v1449 = vunpack.c.l.b16 %v978
        %v1450 = vunpack.c.h.b16 %v978
        %v1451 = vunpack.c.l.b16 %v979
        %v1452 = vunpack.c.h.b16 %v979
        %v1453 = vunpack.c.l.b16 %v980
        %v1454 = vunpack.c.h.b16 %v980
        %v1455 = vunpack.c.l.b16 %v981
        %v1456 = vunpack.c.h.b16 %v981
        %v1457 = vunpack.c.l.b16 %v982
        %v1458 = vunpack.c.h.b16 %v982
        %v1459 = vunpack.c.l.b16 %v983
        %v1460 = vunpack.c.h.b16 %v983
        %v1461 = vunpack.c.l.b16 %v984
        %v1462 = vunpack.c.h.b16 %v984
        %v1463 = vunpack.c.l.b16 %v985
        %v1464 = vunpack.c.h.b16 %v985
        %v1465 = vunpack.c.l.b16 %v986
        %v1466 = vunpack.c.h.b16 %v986
        %v1467 = vunpack.c.l.b16 %v987
        %v1468 = vunpack.c.h.b16 %v987
        %v1469 = vunpack.c.l.b16 %v988
        %v1470 = vunpack.c.h.b16 %v988
        %v1471 = vunpack.c.l.b16 %v989
        %v1472 = vunpack.c.h.b16 %v989
        %v1473 = vunpack.c.l.b16 %v990
        %v1474 = vunpack.c.h.b16 %v990
        %v1475 = vunpack.c.l.b16 %v991
        %v1476 = vunpack.c.h.b16 %v991
        %v1477 = vunpack.c.l.b16 %v992
        %v1478 = vunpack.c.h.b16 %v992
        %v1479 = vunpack.c.l.b16 %v993
        %v1480 = vunpack.c.h.b16 %v993
        %v1481 = vunpack.c.l.b16 %v994
        %v1482 = vunpack.c.h.b16 %v994
        %v1483 = vunpack.c.l.b16 %v995
        %v1484 = vunpack.c.h.b16 %v995
        %v1485 = vunpack.c.l.b16 %v996
        %v1486 = vunpack.c.h.b16 %v996
        %v1487 = vunpack.c.l.b16 %v997
        %v1488 = vunpack.c.h.b16 %v997
        %v1489 = vunpack.c.l.b16 %v998
        %v1490 = vunpack.c.h.b16 %v998
        %v1491 = vunpack.c.l.b16 %v999
        %v1492 = vunpack.c.h.b16 %v999
        %v1493 = vunpack.c.l.b16 %v1000
        %v1494 = vunpack.c.h.b16 %v1000
        %v1495 = vunpack.c.l.b16 %v1001
        %v1496 = vunpack.c.h.b16 %v1001
        %v1497 = vunpack.c.l.b16 %v1002
        %v1498 = vunpack.c.h.b16 %v1002
        %v1499 = vunpack.c.l.b16 %v1003
        %v1500 = vunpack.c.h.b16 %v1003
        %v1501 = vunpack.c.l.b16 %v1004
        %v1502 = vunpack.c.h.b16 %v1004
        %v1503 = vunpack.c.l.b16 %v1005
        %v1504 = vunpack.c.h.b16 %v1005
        %v1505 = vunpack.c.l.b16 %v1006
        %v1506 = vunpack.c.h.b16 %v1006
        %v1507 = vunpack.c.l.b16 %v1007
        %v1508 = vunpack.c.h.b16 %v1007
        %v1509 = vunpack.c.l.b16 %v1008
        %v1510 = vunpack.c.h.b16 %v1008
        %v1511 = vunpack.c.l.b16 %v1009
        %v1512 = vunpack.c.h.b16 %v1009
        %v1513 = vunpack.c.l.b16 %v1010
        %v1514 = vunpack.c.h.b16 %v1010
        %v1515 = vunpack.c.l.b16 %v1011
        %v1516 = vunpack.c.h.b16 %v1011
        %v1517 = vunpack.c.l.b16 %v1012
        %v1518 = vunpack.c.h.b16 %v1012
        %v1519 = vunpack.c.l.b16 %v1013
        %v1520 = vunpack.c.h.b16 %v1013
        %v1521 = vunpack.c.l.b16 %v1014
        %v1522 = vunpack.c.h.b16 %v1014
        %v1523 = vunpack.c.l.b16 %v1015
        %v1524 = vunpack.c.h.b16 %v1015
        %v1525 = vunpack.c.l.b16 %v1016
        %v1526 = vunpack.c.h.b16 %v1016
        %v1527 = vunpack.c.l.b16 %v1017
        %v1528 = vunpack.c.h.b16 %v1017
        %v1529 = vunpack.c.l.b16 %v1018
        %v1530 = vunpack.c.h.b16 %v1018
        %v1531 = vunpack.c.l.b16 %v1019
        %v1532 = vunpack.c.h.b16 %v1019
        %v1533 = vunpack.c.l.b16 %v1020
        %v1534 = vunpack.c.h.b16 %v1020
        %v1535 = vunpack.c.l.b16 %v1021
        %v1536 = vunpack.c.h.b16 %v1021
        %v1537 = vunpack.c.l.b16 %v1022
        %v1538 = vunpack.c.h.b16 %v1022
        %v1539 = vunpack.c.l.b16 %v1023
        %v1540 = vunpack.c.h.b16 %v1023
        %v1541 = vunpack.c.l.b16 %v1024
        %v1542 = vunpack.c.h.b16 %v1024
        %v1543 = vunpack.c.l.b16 %v1025
        %v1544 = vunpack.c.h.b16 %v1025
        %v1545 = vunpack.c.l.b16 %v1026
        %v1546 = vunpack.c.h.b16 %v1026
        %v1547 = vunpack.c.l.b16 %v1027
        %v1548 = vunpack.c.h.b16 %v1027
        %v1549 = vunpack.c.l.b16 %v1028
        %v1550 = vunpack.c.h.b16 %v1028
        %v1551 = vunpack.c.l.b16 %v1029
        %v1552 = vunpack.c.h.b16 %v1029
        %v1553 = vpack.c.b16 %v1429, %v1425
        %v1554 = vpack.c.b16 %v1430, %v1426
        %v1555 = vpack.c.b16 %v1431, %v1427
        %v1556 = vpack.c.b16 %v1432, %v1428
        %v1557 = vpack.c.b16 %v1437, %v1433
        %v1558 = vpack.c.b16 %v1438, %v1434
        %v1559 = vpack.c.b16 %v1439, %v1435
        %v1560 = vpack.c.b16 %v1440, %v1436
        %v1561 = vpack.c.b16 %v1445, %v1441
        %v1562 = vpack.c.b16 %v1446, %v1442
        %v1563 = vpack.c.b16 %v1447, %v1443
        %v1564 = vpack.c.b16 %v1448, %v1444
        %v1565 = vpack.c.b16 %v1453, %v1449
        %v1566 = vpack.c.b16 %v1454, %v1450
        %v1567 = vpack.c.b16 %v1455, %v1451
        %v1568 = vpack.c.b16 %v1456, %v1452
        %v1569 = vpack.c.b16 %v1461, %v1457
        %v1570 = vpack.c.b16 %v1462, %v1458
        %v1571 = vpack.c.b16 %v1463, %v1459
        %v1572 = vpack.c.b16 %v1464, %v1460
        %v1573 = vpack.c.b16 %v1469, %v1465
        %v1574 = vpack.c.b16 %v1470, %v1466
        %v1575 = vpack.c.b16 %v1471, %v1467
        %v1576 = vpack.c.b16 %v1472, %v1468
        %v1577 = vpack.c.b16 %v1477, %v1473
        %v1578 = vpack.c.b16 %v1478, %v1474
        %v1579 = vpack.c.b16 %v1479, %v1475
        %v1580 = vpack.c.b16 %v1480, %v1476
        %v1581 = vpack.c.b16 %v1485, %v1481
        %v1582 = vpack.c.b16 %v1486, %v1482
        %v1583 = vpack.c.b16 %v1487, %v1483
        %v1584 = vpack.c.b16 %v1488, %v1484
        %v1585 = vpack.c.b16 %v1493, %v1489
        %v1586 = vpack.c.b16 %v1494, %v1490
        %v1587 = vpack.c.b16 %v1495, %v1491
        %v1588 = vpack.c.b16 %v1496, %v1492
        %v1589 = vpack.c.b16 %v1501, %v1497
        %v1590 = vpack.c.b16 %v1502, %v1498
        %v1591 = vpack.c.b16 %v1503, %v1499
        %v1592 = vpack.c.b16 %v1504, %v1500
        %v1593 = vpack.c.b16 %v1509, %v1505
        %v1594 = vpack.c.b16 %v1510, %v1506
        %v1595 = vpack.c.b16 %v1511, %v1507
        %v1596 = vpack.c.b16 %v1512, %v1508
        %v1597 = vpack.c.b16 %v1517, %v1513
        %v1598 = vpack.c.b16 %v1518, %v1514
        %v1599 = vpack.c.b16 %v1519, %v1515
        %v1600 = vpack.c.b16 %v1520, %v1516
        %v1601 = vpack.c.b16 %v1525, %v1521
        %v1602 = vpack.c.b16 %v1526, %v1522
        %v1603 = vpack.c.b16 %v1527, %v1523
        %v1604 = vpack.c.b16 %v1528, %v1524
        %v1605 = vpack.c.b16 %v1533, %v1529
        %v1606 = vpack.c.b16 %v1534, %v1530
        %v1607 = vpack.c.b16 %v1535, %v1531
        %v1608 = vpack.c.b16 %v1536, %v1532
        %v1609 = vpack.c.b16 %v1541, %v1537
        %v1610 = vpack.c.b16 %v1542, %v1538
        %v1611 = vpack.c.b16 %v1543, %v1539
        %v1612 = vpack.c.b16 %v1544, %v1540
        %v1613 = vpack.c.b16 %v1549, %v1545
        %v1614 = vpack.c.b16 %v1550, %v1546
        %v1615 = vpack.c.b16 %v1551, %v1547
        %v1616 = vpack.c.b16 %v1552, %v1548
        %1681 = vmatprep.subr.bf16.mxu0 %v1554
        %1682 = vmatpush1.bf16.msra.mxu0 %v1553
        %1683 = vmatprep.subr.bf16.mxu0 %v1558
        %1684 = vmatpush1.bf16.msra.mxu0 %v1557
        %1685 = vmatprep.subr.bf16.mxu0 %v1562
        %1686 = vmatpush1.bf16.msra.mxu0 %v1561
        %1687 = vmatprep.subr.bf16.mxu0 %v1566
        %1688 = vmatpush1.bf16.msra.mxu0 %v1565
        %1689 = vmatprep.subr.bf16.mxu0 %v1570
        %1690 = vmatpush1.bf16.msra.mxu0 %v1569
        %1691 = vmatprep.subr.bf16.mxu0 %v1574
        %1692 = vmatpush1.bf16.msra.mxu0 %v1573
        %1693 = vmatprep.subr.bf16.mxu0 %v1578
        %1694 = vmatpush1.bf16.msra.mxu0 %v1577
        %1695 = vmatprep.subr.bf16.mxu0 %v1582
        %1696 = vmatpush1.bf16.msra.mxu0 %v1581
        %1697 = vmatprep.subr.bf16.mxu0 %v1586
        %1698 = vmatpush1.bf16.msra.mxu0 %v1585
        %1699 = vmatprep.subr.bf16.mxu0 %v1590
        %1700 = vmatpush1.bf16.msra.mxu0 %v1589
        %1701 = vmatprep.subr.bf16.mxu0 %v1594
        %1702 = vmatpush1.bf16.msra.mxu0 %v1593
        %1703 = vmatprep.subr.bf16.mxu0 %v1598
        %1704 = vmatpush1.bf16.msra.mxu0 %v1597
        %1705 = vmatprep.subr.bf16.mxu0 %v1602
        %1706 = vmatpush1.bf16.msra.mxu0 %v1601
        %1707 = vmatprep.subr.bf16.mxu0 %v1606
        %1708 = vmatpush1.bf16.msra.mxu0 %v1605
        %1709 = vmatprep.subr.bf16.mxu0 %v1610
        %1710 = vmatpush1.bf16.msra.mxu0 %v1609
        %1711 = vmatprep.subr.bf16.mxu0 %v1614
        %1712 = vmatpush1.bf16.msra.mxu0 %v1613
        %1713 = vmatprep.mubr.bf16.mxu0 %v1358
        %1714 = vmatmul.mubr.bf16.gmra.mrb[0].mxu0 %v1357
        %v1715 = vpop.f32.mrb[0].mxu0
        %v1716 = vadd.f32 %v1257, %v1715
        %v1717 = vpop.f32.mrb[0].mxu0
        %v1718 = vadd.f32 %v1259, %v1717
        %v1719 = vpop.f32.mrb[0].mxu0
        %v1720 = vpop.f32.mrb[0].mxu0
        %1721 = vdwg.mxu0
        %1722 = vmatprep.subr.bf16.mxu0 %v1556
        %1723 = vmatpush1.bf16.msra.mxu0 %v1555
        %1724 = vmatprep.subr.bf16.mxu0 %v1560
        %1725 = vmatpush1.bf16.msra.mxu0 %v1559
        %1726 = vmatprep.subr.bf16.mxu0 %v1564
        %1727 = vmatpush1.bf16.msra.mxu0 %v1563
        %1728 = vmatprep.subr.bf16.mxu0 %v1568
        %1729 = vmatpush1.bf16.msra.mxu0 %v1567
        %1730 = vmatprep.subr.bf16.mxu0 %v1572
        %1731 = vmatpush1.bf16.msra.mxu0 %v1571
        %1732 = vmatprep.subr.bf16.mxu0 %v1576
        %1733 = vmatpush1.bf16.msra.mxu0 %v1575
        %1734 = vmatprep.subr.bf16.mxu0 %v1580
        %1735 = vmatpush1.bf16.msra.mxu0 %v1579
        %1736 = vmatprep.subr.bf16.mxu0 %v1584
        %1737 = vmatpush1.bf16.msra.mxu0 %v1583
        %1738 = vmatprep.subr.bf16.mxu0 %v1588
        %1739 = vmatpush1.bf16.msra.mxu0 %v1587
        %1740 = vmatprep.subr.bf16.mxu0 %v1592
        %1741 = vmatpush1.bf16.msra.mxu0 %v1591
        %1742 = vmatprep.subr.bf16.mxu0 %v1596
        %1743 = vmatpush1.bf16.msra.mxu0 %v1595
        %1744 = vmatprep.subr.bf16.mxu0 %v1600
        %1745 = vmatpush1.bf16.msra.mxu0 %v1599
        %1746 = vmatprep.subr.bf16.mxu0 %v1604
        %1747 = vmatpush1.bf16.msra.mxu0 %v1603
        %1748 = vmatprep.subr.bf16.mxu0 %v1608
        %1749 = vmatpush1.bf16.msra.mxu0 %v1607
        %1750 = vmatprep.subr.bf16.mxu0 %v1612
        %1751 = vmatpush1.bf16.msra.mxu0 %v1611
        %1752 = vmatprep.subr.bf16.mxu0 %v1616
        %1753 = vmatpush1.bf16.msra.mxu0 %v1615
        %1754 = vmatprep.mubr.bf16.mxu0 %v1358
        %1755 = vmatmul.mubr.bf16.gmra.mrb[0].mxu0 %v1357
        %v1756 = vpop.f32.mrb[0].mxu0
        %v1757 = vadd.f32 %v1298, %v1756
        %v1758 = vpop.f32.mrb[0].mxu0
        %v1759 = vadd.f32 %v1300, %v1758
        %v1760 = vpop.f32.mrb[0].mxu0
        %v1761 = vpop.f32.mrb[0].mxu0
        %1762 = vdwg.mxu0
        %v1763 = vpack.c.bf16 %v743, %v743
        %v1764 = vld [vmem:[#allocation13] sm:$0xff]
        %v1765 = vld [vmem:[#allocation13 + $0x8] sm:$0xff]
        %v1766 = vld [vmem:[#allocation13 + $0x10] sm:$0xff]
        %v1767 = vld [vmem:[#allocation13 + $0x18] sm:$0xff]
        %v1768 = vld [vmem:[#allocation13 + $0x20] sm:$0xff]
        %v1769 = vld [vmem:[#allocation13 + $0x28] sm:$0xff]
        %v1770 = vld [vmem:[#allocation13 + $0x30] sm:$0xff]
        %v1771 = vld [vmem:[#allocation13 + $0x38] sm:$0xff]
        %v1772 = vld [vmem:[#allocation13 + $0x40] sm:$0xff]
        %v1773 = vld [vmem:[#allocation13 + $0x48] sm:$0xff]
        %v1774 = vld [vmem:[#allocation13 + $0x50] sm:$0xff]
        %v1775 = vld [vmem:[#allocation13 + $0x58] sm:$0xff]
        %v1776 = vld [vmem:[#allocation13 + $0x60] sm:$0xff]
        %v1777 = vld [vmem:[#allocation13 + $0x68] sm:$0xff]
        %v1778 = vld [vmem:[#allocation13 + $0x70] sm:$0xff]
        %v1779 = vld [vmem:[#allocation13 + $0x78] sm:$0xff]
        %v1780 = vld [vmem:[#allocation13 + $0x80] sm:$0xff]
        %v1781 = vld [vmem:[#allocation13 + $0x88] sm:$0xff]
        %v1782 = vld [vmem:[#allocation13 + $0x90] sm:$0xff]
        %v1783 = vld [vmem:[#allocation13 + $0x98] sm:$0xff]
        %v1784 = vld [vmem:[#allocation13 + $0xa0] sm:$0xff]
        %v1785 = vld [vmem:[#allocation13 + $0xa8] sm:$0xff]
        %v1786 = vld [vmem:[#allocation13 + $0xb0] sm:$0xff]
        %v1787 = vld [vmem:[#allocation13 + $0xb8] sm:$0xff]
        %v1788 = vld [vmem:[#allocation13 + $0xc0] sm:$0xff]
        %v1789 = vld [vmem:[#allocation13 + $0xc8] sm:$0xff]
        %v1790 = vld [vmem:[#allocation13 + $0xd0] sm:$0xff]
        %v1791 = vld [vmem:[#allocation13 + $0xd8] sm:$0xff]
        %v1792 = vld [vmem:[#allocation13 + $0xe0] sm:$0xff]
        %v1793 = vld [vmem:[#allocation13 + $0xe8] sm:$0xff]
        %v1794 = vld [vmem:[#allocation13 + $0xf0] sm:$0xff]
        %v1795 = vld [vmem:[#allocation13 + $0xf8] sm:$0xff]
        %v1828 = vunpack.c.l.b16 %v1764
        %v1829 = vunpack.c.h.b16 %v1764
        %v1830 = vunpack.c.l.b16 %v1765
        %v1831 = vunpack.c.h.b16 %v1765
        %v1832 = vunpack.c.l.b16 %v1766
        %v1833 = vunpack.c.h.b16 %v1766
        %v1834 = vunpack.c.l.b16 %v1767
        %v1835 = vunpack.c.h.b16 %v1767
        %v1836 = vunpack.c.l.b16 %v1768
        %v1837 = vunpack.c.h.b16 %v1768
        %v1838 = vunpack.c.l.b16 %v1769
        %v1839 = vunpack.c.h.b16 %v1769
        %v1840 = vunpack.c.l.b16 %v1770
        %v1841 = vunpack.c.h.b16 %v1770
        %v1842 = vunpack.c.l.b16 %v1771
        %v1843 = vunpack.c.h.b16 %v1771
        %v1844 = vunpack.c.l.b16 %v1772
        %v1845 = vunpack.c.h.b16 %v1772
        %v1846 = vunpack.c.l.b16 %v1773
        %v1847 = vunpack.c.h.b16 %v1773
        %v1848 = vunpack.c.l.b16 %v1774
        %v1849 = vunpack.c.h.b16 %v1774
        %v1850 = vunpack.c.l.b16 %v1775
        %v1851 = vunpack.c.h.b16 %v1775
        %v1852 = vunpack.c.l.b16 %v1776
        %v1853 = vunpack.c.h.b16 %v1776
        %v1854 = vunpack.c.l.b16 %v1777
        %v1855 = vunpack.c.h.b16 %v1777
        %v1856 = vunpack.c.l.b16 %v1778
        %v1857 = vunpack.c.h.b16 %v1778
        %v1858 = vunpack.c.l.b16 %v1779
        %v1859 = vunpack.c.h.b16 %v1779
        %v1860 = vunpack.c.l.b16 %v1780
        %v1861 = vunpack.c.h.b16 %v1780
        %v1862 = vunpack.c.l.b16 %v1781
        %v1863 = vunpack.c.h.b16 %v1781
        %v1864 = vunpack.c.l.b16 %v1782
        %v1865 = vunpack.c.h.b16 %v1782
        %v1866 = vunpack.c.l.b16 %v1783
        %v1867 = vunpack.c.h.b16 %v1783
        %v1868 = vunpack.c.l.b16 %v1784
        %v1869 = vunpack.c.h.b16 %v1784
        %v1870 = vunpack.c.l.b16 %v1785
        %v1871 = vunpack.c.h.b16 %v1785
        %v1872 = vunpack.c.l.b16 %v1786
        %v1873 = vunpack.c.h.b16 %v1786
        %v1874 = vunpack.c.l.b16 %v1787
        %v1875 = vunpack.c.h.b16 %v1787
        %v1876 = vunpack.c.l.b16 %v1788
        %v1877 = vunpack.c.h.b16 %v1788
        %v1878 = vunpack.c.l.b16 %v1789
        %v1879 = vunpack.c.h.b16 %v1789
        %v1880 = vunpack.c.l.b16 %v1790
        %v1881 = vunpack.c.h.b16 %v1790
        %v1882 = vunpack.c.l.b16 %v1791
        %v1883 = vunpack.c.h.b16 %v1791
        %v1884 = vunpack.c.l.b16 %v1792
        %v1885 = vunpack.c.h.b16 %v1792
        %v1886 = vunpack.c.l.b16 %v1793
        %v1887 = vunpack.c.h.b16 %v1793
        %v1888 = vunpack.c.l.b16 %v1794
        %v1889 = vunpack.c.h.b16 %v1794
        %v1890 = vunpack.c.l.b16 %v1795
        %v1891 = vunpack.c.h.b16 %v1795
        %v1892 = vpack.c.b16 %v1832, %v1828
        %v1893 = vpack.c.b16 %v1833, %v1829
        %v1894 = vpack.c.b16 %v1834, %v1830
        %v1895 = vpack.c.b16 %v1835, %v1831
        %v1896 = vpack.c.b16 %v1840, %v1836
        %v1897 = vpack.c.b16 %v1841, %v1837
        %v1898 = vpack.c.b16 %v1842, %v1838
        %v1899 = vpack.c.b16 %v1843, %v1839
        %v1900 = vpack.c.b16 %v1848, %v1844
        %v1901 = vpack.c.b16 %v1849, %v1845
        %v1902 = vpack.c.b16 %v1850, %v1846
        %v1903 = vpack.c.b16 %v1851, %v1847
        %v1904 = vpack.c.b16 %v1856, %v1852
        %v1905 = vpack.c.b16 %v1857, %v1853
        %v1906 = vpack.c.b16 %v1858, %v1854
        %v1907 = vpack.c.b16 %v1859, %v1855
        %v1908 = vpack.c.b16 %v1864, %v1860
        %v1909 = vpack.c.b16 %v1865, %v1861
        %v1910 = vpack.c.b16 %v1866, %v1862
        %v1911 = vpack.c.b16 %v1867, %v1863
        %v1912 = vpack.c.b16 %v1872, %v1868
        %v1913 = vpack.c.b16 %v1873, %v1869
        %v1914 = vpack.c.b16 %v1874, %v1870
        %v1915 = vpack.c.b16 %v1875, %v1871
        %v1916 = vpack.c.b16 %v1880, %v1876
        %v1917 = vpack.c.b16 %v1881, %v1877
        %v1918 = vpack.c.b16 %v1882, %v1878
        %v1919 = vpack.c.b16 %v1883, %v1879
        %v1920 = vpack.c.b16 %v1888, %v1884
        %v1921 = vpack.c.b16 %v1889, %v1885
        %v1922 = vpack.c.b16 %v1890, %v1886
        %v1923 = vpack.c.b16 %v1891, %v1887
        %1956 = vmatprep.subr.bf16.mxu0 %v1893
        %1957 = vmatpush1.bf16.msra.mxu0 %v1892
        %1958 = vmatprep.subr.bf16.mxu0 %v1897
        %1959 = vmatpush1.bf16.msra.mxu0 %v1896
        %1960 = vmatprep.subr.bf16.mxu0 %v1901
        %1961 = vmatpush1.bf16.msra.mxu0 %v1900
        %1962 = vmatprep.subr.bf16.mxu0 %v1905
        %1963 = vmatpush1.bf16.msra.mxu0 %v1904
        %1964 = vmatprep.subr.bf16.mxu0 %v1909
        %1965 = vmatpush1.bf16.msra.mxu0 %v1908
        %1966 = vmatprep.subr.bf16.mxu0 %v1913
        %1967 = vmatpush1.bf16.msra.mxu0 %v1912
        %1968 = vmatprep.subr.bf16.mxu0 %v1917
        %1969 = vmatpush1.bf16.msra.mxu0 %v1916
        %1970 = vmatprep.subr.bf16.mxu0 %v1921
        %1971 = vmatpush1.bf16.msra.mxu0 %v1920
        %1972 = vmatprep.subr.bf16.mxu0 0
        %1973 = vmatpush1.bf16.msra.mxu0 0
        %1974 = vmatprep.subr.bf16.mxu0 0
        %1975 = vmatpush1.bf16.msra.mxu0 0
        %1976 = vmatprep.subr.bf16.mxu0 0
        %1977 = vmatpush1.bf16.msra.mxu0 0
        %1978 = vmatprep.subr.bf16.mxu0 0
        %1979 = vmatpush1.bf16.msra.mxu0 0
        %1980 = vmatprep.subr.bf16.mxu0 0
        %1981 = vmatpush1.bf16.msra.mxu0 0
        %1982 = vmatprep.subr.bf16.mxu0 0
        %1983 = vmatpush1.bf16.msra.mxu0 0
        %1984 = vmatprep.subr.bf16.mxu0 0
        %1985 = vmatpush1.bf16.msra.mxu0 0
        %1986 = vmatprep.subr.bf16.mxu0 0
        %1987 = vmatpush1.bf16.msra.mxu0 0
        %1988 = vmatprep.mubr.bf16.mxu0 0
        %1989 = vmatmul.mubr.bf16.gmra.mrb[0].mxu0 %v1763
        %v1990 = vpop.f32.mrb[0].mxu0
        %v1991 = vadd.f32 0.0, %v1990
        %v1992 = vpop.f32.mrb[0].mxu0
        %v1993 = vadd.f32 0.0, %v1992
        %v1994 = vpop.f32.mrb[0].mxu0
        %v1995 = vpop.f32.mrb[0].mxu0
        %1996 = vdwg.mxu0
        %1997 = vmatprep.subr.bf16.mxu0 %v1895
        %1998 = vmatpush1.bf16.msra.mxu0 %v1894
        %1999 = vmatprep.subr.bf16.mxu0 %v1899
        %2000 = vmatpush1.bf16.msra.mxu0 %v1898
        %2001 = vmatprep.subr.bf16.mxu0 %v1903
        %2002 = vmatpush1.bf16.msra.mxu0 %v1902
        %2003 = vmatprep.subr.bf16.mxu0 %v1907
        %2004 = vmatpush1.bf16.msra.mxu0 %v1906
        %2005 = vmatprep.subr.bf16.mxu0 %v1911
        %2006 = vmatpush1.bf16.msra.mxu0 %v1910
        %2007 = vmatprep.subr.bf16.mxu0 %v1915
        %2008 = vmatpush1.bf16.msra.mxu0 %v1914
        %2009 = vmatprep.subr.bf16.mxu0 %v1919
        %2010 = vmatpush1.bf16.msra.mxu0 %v1918
        %2011 = vmatprep.subr.bf16.mxu0 %v1923
        %2012 = vmatpush1.bf16.msra.mxu0 %v1922
        %2013 = vmatprep.subr.bf16.mxu0 0
        %2014 = vmatpush1.bf16.msra.mxu0 0
        %2015 = vmatprep.subr.bf16.mxu0 0
        %2016 = vmatpush1.bf16.msra.mxu0 0
        %2017 = vmatprep.subr.bf16.mxu0 0
        %2018 = vmatpush1.bf16.msra.mxu0 0
        %2019 = vmatprep.subr.bf16.mxu0 0
        %2020 = vmatpush1.bf16.msra.mxu0 0
        %2021 = vmatprep.subr.bf16.mxu0 0
        %2022 = vmatpush1.bf16.msra.mxu0 0
        %2023 = vmatprep.subr.bf16.mxu0 0
        %2024 = vmatpush1.bf16.msra.mxu0 0
        %2025 = vmatprep.subr.bf16.mxu0 0
        %2026 = vmatpush1.bf16.msra.mxu0 0
        %2027 = vmatprep.subr.bf16.mxu0 0
        %2028 = vmatpush1.bf16.msra.mxu0 0
        %2029 = vmatprep.mubr.bf16.mxu0 0
        %2030 = vmatmul.mubr.bf16.gmra.mrb[0].mxu0 %v1763
        %v2031 = vpop.f32.mrb[0].mxu0
        %v2032 = vadd.f32 0.0, %v2031
        %v2033 = vpop.f32.mrb[0].mxu0
        %v2034 = vadd.f32 0.0, %v2033
        %v2035 = vpop.f32.mrb[0].mxu0
        %v2036 = vpop.f32.mrb[0].mxu0
        %2037 = vdwg.mxu0
        %v2038 = vadd.f32 %v1716, %v1991
        %v2039 = vadd.f32 %v1718, %v1993
        %v2040 = vadd.f32 %v1757, %v2032
        %v2041 = vadd.f32 %v1759, %v2034
        %v2042 = vld [vmem:[%s10] sm:$0xf]
        %v2044 = vlaneseq
        %v2045 = vshrl.u32 %v2044, 7
        %v2046 = vsub.s32 0, %v2045
        %v2047 = vrot.slane %v2042, %v2046
        %v2048 = vlaneseq
        %v2049 = vshrl.u32 %v2048, 7
        %v2050 = vsub.s32 1, %v2049
        %v2051 = vrot.slane %v2042, %v2050
        %v2052 = vlaneseq
        %v2053 = vshrl.u32 %v2052, 7
        %v2054 = vsub.s32 2, %v2053
        %v2055 = vrot.slane %v2042, %v2054
        %v2056 = vlaneseq
        %v2057 = vshrl.u32 %v2056, 7
        %v2058 = vsub.s32 3, %v2057
        %v2059 = vrot.slane %v2042, %v2058
        %v2064 = vadd.f32 %v2038, %v2047
        %v2065 = vadd.f32 %v2039, %v2051
        %v2066 = vadd.f32 %v2040, %v2055
        %v2067 = vadd.f32 %v2041, %v2059
        %v2068 = vxor.u32 %v2064, 2147483648
        %v2069 = vmul.f32 %v2068, 1.442695
        %v2070 = vpow.pop %v2069
        %v2071 = vadd.f32 %v2070, 1.0
        %v2072 = vrcp.pop %v2071
        %v2073 = vmul.f32 1.0, %v2072
        %v2074 = vxor.u32 %v2065, 2147483648
        %v2075 = vmul.f32 %v2074, 1.442695
        %v2076 = vpow.pop %v2075
        %v2077 = vadd.f32 %v2076, 1.0
        %v2078 = vrcp.pop %v2077
        %v2079 = vmul.f32 1.0, %v2078
        %v2080 = vtanh.pop %v2066
        %v2081 = vxor.u32 %v2067, 2147483648
        %v2082 = vmul.f32 %v2081, 1.442695
        %v2083 = vpow.pop %v2082
        %v2084 = vadd.f32 %v2083, 1.0
        %v2085 = vrcp.pop %v2084
        %v2086 = vmul.f32 1.0, %v2085
        %v2087 = vmul.f32 %v2079, %v744
        %v2088 = vmul.f32 %v2073, %v2080
        %v2089 = vadd.f32 %v2087, %v2088
        %v2090 = vtanh.pop %v2089
        %v2091 = vmul.f32 %v2086, %v2090
        %v2092 = vpack.c.bf16 %v2091, %v2091
        %v2093 = vld [vmem:[#allocation14] sm:$0xff]
        %v2094 = vld [vmem:[#allocation14 + $0x8] sm:$0xff]
        %v2095 = vld [vmem:[#allocation14 + $0x10] sm:$0xff]
        %v2096 = vld [vmem:[#allocation14 + $0x18] sm:$0xff]
        %v2097 = vld [vmem:[#allocation14 + $0x20] sm:$0xff]
        %v2098 = vld [vmem:[#allocation14 + $0x28] sm:$0xff]
        %v2099 = vld [vmem:[#allocation14 + $0x30] sm:$0xff]
        %v2100 = vld [vmem:[#allocation14 + $0x38] sm:$0xff]
        %v2101 = vld [vmem:[#allocation14 + $0x40] sm:$0xff]
        %v2102 = vld [vmem:[#allocation14 + $0x48] sm:$0xff]
        %v2103 = vld [vmem:[#allocation14 + $0x50] sm:$0xff]
        %v2104 = vld [vmem:[#allocation14 + $0x58] sm:$0xff]
        %v2105 = vld [vmem:[#allocation14 + $0x60] sm:$0xff]
        %v2106 = vld [vmem:[#allocation14 + $0x68] sm:$0xff]
        %v2107 = vld [vmem:[#allocation14 + $0x70] sm:$0xff]
        %v2108 = vld [vmem:[#allocation14 + $0x78] sm:$0xff]
        %v2109 = vld [vmem:[%s12] sm:$0x3]
        %v2111 = vlaneseq
        %v2112 = vshrl.u32 %v2111, 7
        %v2113 = vsub.s32 0, %v2112
        %v2114 = vrot.slane %v2109, %v2113
        %v2115 = vlaneseq
        %v2116 = vshrl.u32 %v2115, 7
        %v2117 = vsub.s32 1, %v2116
        %v2118 = vrot.slane %v2109, %v2117
        %v2137 = vunpack.c.l.b16 %v2093
        %v2138 = vunpack.c.h.b16 %v2093
        %v2139 = vunpack.c.l.b16 %v2094
        %v2140 = vunpack.c.h.b16 %v2094
        %v2141 = vunpack.c.l.b16 %v2095
        %v2142 = vunpack.c.h.b16 %v2095
        %v2143 = vunpack.c.l.b16 %v2096
        %v2144 = vunpack.c.h.b16 %v2096
        %v2145 = vunpack.c.l.b16 %v2097
        %v2146 = vunpack.c.h.b16 %v2097
        %v2147 = vunpack.c.l.b16 %v2098
        %v2148 = vunpack.c.h.b16 %v2098
        %v2149 = vunpack.c.l.b16 %v2099
        %v2150 = vunpack.c.h.b16 %v2099
        %v2151 = vunpack.c.l.b16 %v2100
        %v2152 = vunpack.c.h.b16 %v2100
        %v2153 = vunpack.c.l.b16 %v2101
        %v2154 = vunpack.c.h.b16 %v2101
        %v2155 = vunpack.c.l.b16 %v2102
        %v2156 = vunpack.c.h.b16 %v2102
        %v2157 = vunpack.c.l.b16 %v2103
        %v2158 = vunpack.c.h.b16 %v2103
        %v2159 = vunpack.c.l.b16 %v2104
        %v2160 = vunpack.c.h.b16 %v2104
        %v2161 = vunpack.c.l.b16 %v2105
        %v2162 = vunpack.c.h.b16 %v2105
        %v2163 = vunpack.c.l.b16 %v2106
        %v2164 = vunpack.c.h.b16 %v2106
        %v2165 = vunpack.c.l.b16 %v2107
        %v2166 = vunpack.c.h.b16 %v2107
        %v2167 = vunpack.c.l.b16 %v2108
        %v2168 = vunpack.c.h.b16 %v2108
        %v2169 = vpack.c.b16 %v2139, %v2137
        %v2170 = vpack.c.b16 %v2140, %v2138
        %v2171 = vpack.c.b16 %v2143, %v2141
        %v2172 = vpack.c.b16 %v2144, %v2142
        %v2173 = vpack.c.b16 %v2147, %v2145
        %v2174 = vpack.c.b16 %v2148, %v2146
        %v2175 = vpack.c.b16 %v2151, %v2149
        %v2176 = vpack.c.b16 %v2152, %v2150
        %v2177 = vpack.c.b16 %v2155, %v2153
        %v2178 = vpack.c.b16 %v2156, %v2154
        %v2179 = vpack.c.b16 %v2159, %v2157
        %v2180 = vpack.c.b16 %v2160, %v2158
        %v2181 = vpack.c.b16 %v2163, %v2161
        %v2182 = vpack.c.b16 %v2164, %v2162
        %v2183 = vpack.c.b16 %v2167, %v2165
        %v2184 = vpack.c.b16 %v2168, %v2166
        %2201 = vmatprep.subr.bf16.mxu0 %v2170
        %2202 = vmatpush1.bf16.msra.mxu0 %v2169
        %2203 = vmatprep.subr.bf16.mxu0 %v2172
        %2204 = vmatpush1.bf16.msra.mxu0 %v2171
        %2205 = vmatprep.subr.bf16.mxu0 %v2174
        %2206 = vmatpush1.bf16.msra.mxu0 %v2173
        %2207 = vmatprep.subr.bf16.mxu0 %v2176
        %2208 = vmatpush1.bf16.msra.mxu0 %v2175
        %2209 = vmatprep.subr.bf16.mxu0 %v2178
        %2210 = vmatpush1.bf16.msra.mxu0 %v2177
        %2211 = vmatprep.subr.bf16.mxu0 %v2180
        %2212 = vmatpush1.bf16.msra.mxu0 %v2179
        %2213 = vmatprep.subr.bf16.mxu0 %v2182
        %2214 = vmatpush1.bf16.msra.mxu0 %v2181
        %2215 = vmatprep.subr.bf16.mxu0 %v2184
        %2216 = vmatpush1.bf16.msra.mxu0 %v2183
        %2217 = vmatprep.subr.bf16.mxu0 0
        %2218 = vmatpush1.bf16.msra.mxu0 0
        %2219 = vmatprep.subr.bf16.mxu0 0
        %2220 = vmatpush1.bf16.msra.mxu0 0
        %2221 = vmatprep.subr.bf16.mxu0 0
        %2222 = vmatpush1.bf16.msra.mxu0 0
        %2223 = vmatprep.subr.bf16.mxu0 0
        %2224 = vmatpush1.bf16.msra.mxu0 0
        %2225 = vmatprep.subr.bf16.mxu0 0
        %2226 = vmatpush1.bf16.msra.mxu0 0
        %2227 = vmatprep.subr.bf16.mxu0 0
        %2228 = vmatpush1.bf16.msra.mxu0 0
        %2229 = vmatprep.subr.bf16.mxu0 0
        %2230 = vmatpush1.bf16.msra.mxu0 0
        %2231 = vmatprep.subr.bf16.mxu0 0
        %2232 = vmatpush1.bf16.msra.mxu0 0
        %2233 = vmatprep.mubr.bf16.mxu0 0
        %2234 = vmatmul.mubr.bf16.gmra.mrb[0].mxu0 %v2092
        %v2235 = vpop.f32.mrb[0].mxu0
        %v2236 = vadd.f32 %v2114, %v2235
        %v2237 = vpop.f32.mrb[0].mxu0
        %v2238 = vadd.f32 %v2118, %v2237
        %v2239 = vpop.f32.mrb[0].mxu0
        %v2240 = vpop.f32.mrb[0].mxu0
        %2241 = vdwg.mxu0
        %2242 = vst [vmem:[%s586] sm:$0xff] %v2236
        %2243 = vst [vmem:[%s586 + $0x8] sm:$0xff] %v2238
        %2244 = vst [vmem:[#allocation17] sm:$0xff] %v2091
        %2245 = vst [vmem:[#allocation19] sm:$0xff] %v2089
        %s2246 = sand.u32 %s323, 1
        %s2247 = scalar_lea.sflag [#allocation6], %s2246
        %s2248 = sand.u32 %s323, 1
        %s2249 = smul.addr %s2248, 16
        %s2250 = scalar_lea.vmem [#allocation16], %s2249
        // Predicated region
        $region105: #{tpu_custom_call.1} parent=71 // pred_check
          %p2251 = pneg %p333
        $region106: #{tpu_custom_call.1} parent=71 // pred_check_branch
          %2253 = sbr.rel (%p2251) target = $region108
        $region107: #{tpu_custom_call.1} parent=71 // pred_region
          %s2255 = ssub.s32 256, 256
          %2256 = vsyncadd %s2247, %s2255
          %s2257 = smul.addr %s37, 2
          %s2258 = smul.addr %s2257, 128
          %s2259 = scalar_lea.hbm %s13, %s2258
          %s2261 = sshll.u32 %s2250, 4
          %s2262 = int_to_ptr.vmem [resolvable:$true] %s2261
          %2264 = dma.vmem_to_hbm [thread:$0]  %s2262, 256, %s2259, %s2247
        $region108: #{tpu_custom_call.1} parent=71 // pred_fallthru
          _
        // Predicated region
        $region109: #{tpu_custom_call.1} parent=71 // pred_check
          %p2265 = pneg %p354
        $region110: #{tpu_custom_call.1} parent=71 // pred_check_branch
          %2267 = sbr.rel (%p2265) target = $region112
        $region111: #{tpu_custom_call.1} parent=71 // pred_region
          %s2269 = ssub.s32 128, 128
          %2270 = vsyncadd [#allocation18], %s2269
          %s2272 = sshll.u32 [#allocation17], 4
          %s2273 = int_to_ptr.vmem [resolvable:$true] %s2272
          %2275 = dma.vmem_to_hbm [thread:$0]  %s2273, 128, %s14, [#allocation18]
        $region112: #{tpu_custom_call.1} parent=71 // pred_fallthru
          _
        // Predicated region
        $region113: #{tpu_custom_call.1} parent=71 // pred_check
          %p2276 = pneg %p375
        $region114: #{tpu_custom_call.1} parent=71 // pred_check_branch
          %2278 = sbr.rel (%p2276) target = $region116
        $region115: #{tpu_custom_call.1} parent=71 // pred_region
          %s2280 = ssub.s32 128, 128
          %2281 = vsyncadd [#allocation18], %s2280
          %s2283 = sshll.u32 [#allocation19], 4
          %s2284 = int_to_ptr.vmem [resolvable:$true] %s2283
          %2286 = dma.vmem_to_hbm [thread:$0]  %s2284, 128, %s15, [#allocation18]
        $region116: #{tpu_custom_call.1} parent=71 // pred_fallthru
          _
        // Predicated region
        $region117: #{tpu_custom_call.1} parent=71 // pred_check
          %p2287 = pneg %p354
        $region118: #{tpu_custom_call.1} parent=71 // pred_check_branch
          %2289 = sbr.rel (%p2287) target = $region120
        $region119: #{tpu_custom_call.1} parent=71 // pred_region
          %2290 = dma.done [#allocation18], 128
        $region120: #{tpu_custom_call.1} parent=71 // pred_fallthru
          _
        // Predicated region
        $region121: #{tpu_custom_call.1} parent=71 // pred_check
          %p2291 = pneg %p375
        $region122: #{tpu_custom_call.1} parent=71 // pred_check_branch
          %2293 = sbr.rel (%p2291) target = $region124
        $region123: #{tpu_custom_call.1} parent=71 // pred_region
          %2294 = dma.done [#allocation18], 128
        $region124: #{tpu_custom_call.1} parent=71 // pred_fallthru
          _
      $region72: #{tpu_custom_call.1} parent=5 // pred_fallthru
        _
      %p2295 = scmp.le.s32.totalorder 2, %s32
      // Predicated region
      $region125: #{tpu_custom_call.1} parent=5 // pred_check
        %p2296 = pneg %p2295
      $region126: #{tpu_custom_call.1} parent=5 // pred_check_branch
        %2298 = sbr.rel (%p2296) target = $region128
      $region127: #{tpu_custom_call.1} parent=5 // pred_region
        %s2299 = ssub.s32 %s32, 2
        // Predicated region
        $region129: #{tpu_custom_call.1} parent=127 // pred_check
          %p2300 = pneg %p339
        $region130: #{tpu_custom_call.1} parent=127 // pred_check_branch
          %2302 = sbr.rel (%p2300) target = $region132
        $region131: #{tpu_custom_call.1} parent=127 // pred_region
          %s2303 = sand.u32 %s324, 1
          %s2304 = scalar_lea.sflag [#allocation6], %s2303
          %s2305 = sand.u32 %s324, 1
          %s2306 = smul.addr %s2305, 16
          %s2307 = scalar_lea.vmem [#allocation16], %s2306
          %2308 = dma.done %s2304, 256
        $region132: #{tpu_custom_call.1} parent=127 // pred_fallthru
          _
      $region128: #{tpu_custom_call.1} parent=5 // pred_fallthru
        _
    $region6: #{tpu_custom_call.1} parent=1 // loop_footer
      %s36 = sadd.s32 1, %s32
    $region7: #{tpu_custom_call.1} parent=1 // loop_footer_branch
      %31 = sbr.rel target = $region3
    $region8: #{tpu_custom_call.1} parent=1 // loop_exit
      _
    %2309 = vsyncpa [#allocation5], 1
    %s2310 = scalar_lea.sflag [#allocation5], 1
    %2311 = vsyncpa %s2310, 1
    %2312 = vsyncpa [#allocation8], 1
    %2313 = vsyncpa [#allocation12], 1
    %2314 = vsyncpa [#allocation15], 1
    %2315 = vsyncpa [#allocation6], 1
    %s2316 = scalar_lea.sflag [#allocation6], 1
    %2317 = vsyncpa %s2316, 1
    %2318 = vsyncpa [#allocation18], 1

</llo_original>
